<compile_context>
chip_gen: v7x
topology: tpu7x:2x2x1
jax: 0.10.0
libtpu: 0.0.40
codegen_flags: <defaults>
</compile_context>

<pallas_src>
import math
from functools import partial

import jax
import jax.numpy as jnp
from jax.experimental import pallas as pl
from jax.experimental.pallas import tpu as pltpu


def _attention_kernel(x_ref, wq_ref, bq_ref, wk_ref, bk_ref, wv_ref, bv_ref,
                      wo_ref, bo_ref, out_ref, z_scratch, *, n_heads, d_head):
    x = x_ref[0]                                   # (T, D) bf16
    T = x.shape[0]

    # ---- fused-over-heads Q/K/V projections: (T, D) @ (D, H*Dh) on the MXU ----
    # (1/sqrt(d_head) is pre-folded into W_Q and b_Q in the wrapper.)
    q = jnp.dot(x, wq_ref[...], preferred_element_type=jnp.float32) + bq_ref[...]
    k = jnp.dot(x, wk_ref[...], preferred_element_type=jnp.float32) + bk_ref[...]
    v = jnp.dot(x, wv_ref[...], preferred_element_type=jnp.float32) + bv_ref[...]
    qb = q.astype(jnp.bfloat16)
    kb = k.astype(jnp.bfloat16)
    vb = v.astype(jnp.bfloat16)

    # Causal mask (strictly upper triangle masked), hoisted out of the head loop.
    row = jax.lax.broadcasted_iota(jnp.int32, (T, T), 0)
    col = jax.lax.broadcasted_iota(jnp.int32, (T, T), 1)
    causal = col <= row

    # ---- per-head scores / softmax / PV, z accumulated into bf16 VMEM scratch ----
    for h in range(n_heads):
        lo = h * d_head
        hi = lo + d_head
        qh = qb[:, lo:hi]                          # (T, Dh)
        kh = kb[:, lo:hi]                          # (T, Dh)
        vh = vb[:, lo:hi]                          # (T, Dh)

        # q @ k^T without materializing the transpose (MXU handles it natively).
        s = jax.lax.dot_general(qh, kh, (((1,), (1,)), ((), ())),
                                preferred_element_type=jnp.float32)   # (T, T)
        s = jnp.where(causal, s, -jnp.inf)

        m = jnp.max(s, axis=-1, keepdims=True)
        e = jnp.exp(s - m)                         # f32 exp on the EUP
        denom = jnp.sum(e, axis=-1, keepdims=True)
        # Diagonal is always unmasked -> denom > 0; no NaN cleanup needed.
        p = e * pl.reciprocal(denom, approx=True)

        zh = jnp.dot(p.astype(jnp.bfloat16), vh,
                     preferred_element_type=jnp.float32)              # (T, Dh) f32
        # Output projection consumes bf16, so round here (numerically identical
        # to the previous f32-store-then-cast, half the scratch traffic).
        z_scratch[:, lo:hi] = zh.astype(jnp.bfloat16)

    # ---- fused output projection: (T, H*Dh) @ (H*Dh, D) + b_O ----
    z = z_scratch[...]                             # bf16
    out = jnp.dot(z, wo_ref[...], preferred_element_type=jnp.float32) + bo_ref[...]
    out_ref[0] = out.astype(out_ref.dtype)


def attention_forward(x, W_Q, b_Q, W_K, b_K, W_V, b_V, W_O, b_O):
    B, T, D = x.shape
    H, _, Dh = W_Q.shape
    HD = H * Dh
    scale = 1.0 / math.sqrt(Dh)

    # Fuse heads into wide projection matrices (bf16 for the MXU); fold the
    # 1/sqrt(d_head) scale into the Q projection + bias.
    Wq = (jnp.transpose(W_Q, (1, 0, 2)).reshape(D, HD) * scale).astype(jnp.bfloat16)
    Wk = jnp.transpose(W_K, (1, 0, 2)).reshape(D, HD).astype(jnp.bfloat16)
    Wv = jnp.transpose(W_V, (1, 0, 2)).reshape(D, HD).astype(jnp.bfloat16)
    Wo = W_O.reshape(HD, D).astype(jnp.bfloat16)
    bq = (b_Q.reshape(1, HD) * scale).astype(jnp.float32)
    bk = b_K.reshape(1, HD).astype(jnp.float32)
    bv = b_V.reshape(1, HD).astype(jnp.float32)
    bo = b_O.reshape(1, D).astype(jnp.float32)
    xb = x.astype(jnp.bfloat16)

    weight_spec = lambda shape: pl.BlockSpec(shape, lambda b: (0, 0))  # resident

    grid_spec = pltpu.PrefetchScalarGridSpec(
        num_scalar_prefetch=0,
        grid=(B,),
        in_specs=[
            pl.BlockSpec((1, T, D), lambda b: (b, 0, 0)),   # x
            weight_spec((D, HD)), weight_spec((1, HD)),     # W_Q, b_Q
            weight_spec((D, HD)), weight_spec((1, HD)),     # W_K, b_K
            weight_spec((D, HD)), weight_spec((1, HD)),     # W_V, b_V
            weight_spec((HD, D)), weight_spec((1, D)),      # W_O, b_O
        ],
        out_specs=pl.BlockSpec((1, T, D), lambda b: (b, 0, 0)),
        scratch_shapes=[pltpu.VMEM((T, HD), jnp.bfloat16)],
    )

    cost = pl.CostEstimate(
        flops=(2 * B * T * D * 3 * HD          # fused QKV projections
               + 4 * B * H * T * T * Dh        # scores + PV
               + 2 * B * T * HD * D),          # fused output projection
        transcendentals=B * H * T * T,         # exp in softmax
        bytes_accessed=(B * T * D * 2          # x (bf16)
                        + B * T * D * 4        # out (f32)
                        + 4 * D * HD * 2       # weights (bf16)
                        + (3 * HD + D) * 4),   # biases (f32)
    )

    kernel = partial(_attention_kernel, n_heads=H, d_head=Dh)

    return pl.pallas_call(
        kernel,
        out_shape=jax.ShapeDtypeStruct((B, T, D), jnp.float32),
        grid_spec=grid_spec,
        compiler_params=pltpu.CompilerParams(
            dimension_semantics=("parallel",)),
        cost_estimate=cost,
    )(xb, Wq, bq, Wk, bk, Wv, bv, Wo, bo)


def ref_attention(x, W_Q, b_Q, W_K, b_K, W_V, b_V, W_O, b_O):
    """Pure-JAX f32 reference mirroring the PyTorch einsums."""
    H, _, Dh = W_Q.shape
    T = x.shape[1]
    q = jnp.einsum('btd,hdk->bthk', x, W_Q) + b_Q
    k = jnp.einsum('btd,hdk->bthk', x, W_K) + b_K
    v = jnp.einsum('btd,hdk->bthk', x, W_V) + b_V
    scores = jnp.einsum('bqhk,bphk->bhqp', q, k) / math.sqrt(Dh)
    mask = jnp.triu(jnp.ones((T, T), dtype=bool), k=1)
    scores = jnp.where(mask, -jnp.inf, scores)
    pattern = jax.nn.softmax(scores, axis=-1)
    pattern = jnp.where(jnp.isnan(pattern), jnp.zeros_like(pattern), pattern)
    z = jnp.einsum('bhqp,bphk->bqhk', pattern, v)
    out = jnp.einsum('bqhk,hkd->bqhd', z, W_O) + b_O / H
    return out.sum(axis=2)


if __name__ == "__main__":
    # Small config consistent with the module (scaled-down GPT-2 attention).
    B, T, D, H, Dh = 2, 8, 32, 4, 8
    init_range = 0.02

    key = jax.random.PRNGKey(0)
    kx, kq, kk, kv, ko = jax.random.split(key, 5)

    x = jax.random.normal(kx, (B, T, D), dtype=jnp.float32)
    W_Q = init_range * jax.random.normal(kq, (H, D, Dh), dtype=jnp.float32)
    W_K = init_range * jax.random.normal(kk, (H, D, Dh), dtype=jnp.float32)
    W_V = init_range * jax.random.normal(kv, (H, D, Dh), dtype=jnp.float32)
    W_O = init_range * jax.random.normal(ko, (H, Dh, D), dtype=jnp.float32)
    b_Q = jnp.zeros((H, Dh), dtype=jnp.float32)
    b_K = jnp.zeros((H, Dh), dtype=jnp.float32)
    b_V = jnp.zeros((H, Dh), dtype=jnp.float32)
    b_O = jnp.zeros((D,), dtype=jnp.float32)

    out = attention_forward(x, W_Q, b_Q, W_K, b_K, W_V, b_V, W_O, b_O)
    out = jax.block_until_ready(out)

    ref = ref_attention(x, W_Q, b_Q, W_K, b_K, W_V, b_V, W_O, b_O)
    assert out.shape == (B, T, D)
    # bf16 matmul operands in the kernel vs full-f32 reference -> bf16 tolerance.
    assert jnp.allclose(out, ref, atol=5e-3, rtol=5e-2), (
        "mismatch vs reference: max abs diff = %r" % float(jnp.max(jnp.abs(out - ref))))

    print("KERNEL_OK")
</pallas_src>

<mosaic_0001>
module attributes {stable_mosaic.version = 11 : i64} {
  func.func @_attention_kernel(%arg0: i32, %arg1: memref<1x8x32xbf16, #tpu.memory_space<vmem>>, %arg2: memref<32x32xbf16, #tpu.memory_space<vmem>>, %arg3: memref<1x32xf32, #tpu.memory_space<vmem>>, %arg4: memref<32x32xbf16, #tpu.memory_space<vmem>>, %arg5: memref<1x32xf32, #tpu.memory_space<vmem>>, %arg6: memref<32x32xbf16, #tpu.memory_space<vmem>>, %arg7: memref<1x32xf32, #tpu.memory_space<vmem>>, %arg8: memref<32x32xbf16, #tpu.memory_space<vmem>>, %arg9: memref<1x32xf32, #tpu.memory_space<vmem>>, %arg10: memref<1x8x32xf32, #tpu.memory_space<vmem>>, %arg11: memref<8x32xbf16, #tpu.memory_space<vmem>>) attributes {dimension_semantics = [#tpu.dimension_semantics<parallel>], iteration_bounds = array<i64: 2>, scalar_prefetch = 0 : i64, scratch_operands = 1 : i64, tpu.core_type = #tpu.core_type<tc>, window_params = [{transform_indices = @transform_0, window_bounds = array<i64: 1, 8, 32>}, {pipeline_mode = #tpu.pipeline_mode<synchronous>, transform_indices = @transform_1, window_bounds = array<i64: 32, 32>}, {pipeline_mode = #tpu.pipeline_mode<synchronous>, transform_indices = @transform_2, window_bounds = array<i64: 1, 32>}, {pipeline_mode = #tpu.pipeline_mode<synchronous>, transform_indices = @transform_3, window_bounds = array<i64: 32, 32>}, {pipeline_mode = #tpu.pipeline_mode<synchronous>, transform_indices = @transform_4, window_bounds = array<i64: 1, 32>}, {pipeline_mode = #tpu.pipeline_mode<synchronous>, transform_indices = @transform_5, window_bounds = array<i64: 32, 32>}, {pipeline_mode = #tpu.pipeline_mode<synchronous>, transform_indices = @transform_6, window_bounds = array<i64: 1, 32>}, {pipeline_mode = #tpu.pipeline_mode<synchronous>, transform_indices = @transform_7, window_bounds = array<i64: 32, 32>}, {pipeline_mode = #tpu.pipeline_mode<synchronous>, transform_indices = @transform_8, window_bounds = array<i64: 1, 32>}, {transform_indices = @transform_9, window_bounds = array<i64: 1, 8, 32>}]} {
    %c0 = arith.constant 0 : index
    %c0_0 = arith.constant 0 : index
    %c0_1 = arith.constant 0 : index
    %0 = vector.load %arg1[%c0, %c0_0, %c0_1] : memref<1x8x32xbf16, #tpu.memory_space<vmem>>, vector<1x8x32xbf16>
    %1 = vector.shape_cast %0 : vector<1x8x32xbf16> to vector<8x32xbf16>
    %c0_2 = arith.constant 0 : index
    %c0_3 = arith.constant 0 : index
    %2 = vector.load %arg2[%c0_2, %c0_3] : memref<32x32xbf16, #tpu.memory_space<vmem>>, vector<32x32xbf16>
    %cst = arith.constant dense<0.000000e+00> : vector<8x32xf32>
    %3 = tpu.matmul %1, %2, %cst {dimension_numbers = #tpu.dot_dimension_numbers<[1], [0], [0], [1], [0, 0, 1, 1], [], []>} : vector<8x32xbf16>, vector<32x32xbf16>, vector<8x32xf32> -> vector<8x32xf32>
    %c0_4 = arith.constant 0 : index
    %c0_5 = arith.constant 0 : index
    %4 = vector.load %arg3[%c0_4, %c0_5] : memref<1x32xf32, #tpu.memory_space<vmem>>, vector<1x32xf32>
    %5 = vector.broadcast %4 : vector<1x32xf32> to vector<8x32xf32>
    %6 = arith.addf %3, %5 : vector<8x32xf32>
    %c0_6 = arith.constant 0 : index
    %c0_7 = arith.constant 0 : index
    %7 = vector.load %arg4[%c0_6, %c0_7] : memref<32x32xbf16, #tpu.memory_space<vmem>>, vector<32x32xbf16>
    %cst_8 = arith.constant dense<0.000000e+00> : vector<8x32xf32>
    %8 = tpu.matmul %1, %7, %cst_8 {dimension_numbers = #tpu.dot_dimension_numbers<[1], [0], [0], [1], [0, 0, 1, 1], [], []>} : vector<8x32xbf16>, vector<32x32xbf16>, vector<8x32xf32> -> vector<8x32xf32>
    %c0_9 = arith.constant 0 : index
    %c0_10 = arith.constant 0 : index
    %9 = vector.load %arg5[%c0_9, %c0_10] : memref<1x32xf32, #tpu.memory_space<vmem>>, vector<1x32xf32>
    %10 = vector.broadcast %9 : vector<1x32xf32> to vector<8x32xf32>
    %11 = arith.addf %8, %10 : vector<8x32xf32>
    %c0_11 = arith.constant 0 : index
    %c0_12 = arith.constant 0 : index
    %12 = vector.load %arg6[%c0_11, %c0_12] : memref<32x32xbf16, #tpu.memory_space<vmem>>, vector<32x32xbf16>
    %cst_13 = arith.constant dense<0.000000e+00> : vector<8x32xf32>
    %13 = tpu.matmul %1, %12, %cst_13 {dimension_numbers = #tpu.dot_dimension_numbers<[1], [0], [0], [1], [0, 0, 1, 1], [], []>} : vector<8x32xbf16>, vector<32x32xbf16>, vector<8x32xf32> -> vector<8x32xf32>
    %c0_14 = arith.constant 0 : index
    %c0_15 = arith.constant 0 : index
    %14 = vector.load %arg7[%c0_14, %c0_15] : memref<1x32xf32, #tpu.memory_space<vmem>>, vector<1x32xf32>
    %15 = vector.broadcast %14 : vector<1x32xf32> to vector<8x32xf32>
    %16 = arith.addf %13, %15 : vector<8x32xf32>
    %17 = arith.truncf %6 : vector<8x32xf32> to vector<8x32xbf16>
    %18 = arith.truncf %11 : vector<8x32xf32> to vector<8x32xbf16>
    %19 = arith.truncf %16 : vector<8x32xf32> to vector<8x32xbf16>
    %20 = tpu.iota {dimensions = array<i32: 0>} : vector<8x8xi32>
    %21 = tpu.iota {dimensions = array<i32: 1>} : vector<8x8xi32>
    %22 = arith.cmpi sle, %21, %20 : vector<8x8xi32>
    %23 = vector.extract_strided_slice %17 {offsets = [0, 0], sizes = [8, 8], strides = [1, 1]} : vector<8x32xbf16> to vector<8x8xbf16>
    %24 = vector.extract_strided_slice %18 {offsets = [0, 0], sizes = [8, 8], strides = [1, 1]} : vector<8x32xbf16> to vector<8x8xbf16>
    %25 = vector.extract_strided_slice %19 {offsets = [0, 0], sizes = [8, 8], strides = [1, 1]} : vector<8x32xbf16> to vector<8x8xbf16>
    %cst_16 = arith.constant dense<0.000000e+00> : vector<8x8xf32>
    %26 = tpu.matmul %23, %24, %cst_16 {dimension_numbers = #tpu.dot_dimension_numbers<[1], [1], [0], [0], [0, 0, 1, 0], [], []>} : vector<8x8xbf16>, vector<8x8xbf16>, vector<8x8xf32> -> vector<8x8xf32>
    %cst_17 = arith.constant 0xFF800000 : f32
    %27 = vector.broadcast %cst_17 : f32 to vector<8x8xf32>
    %28 = arith.select %22, %26, %27 : vector<8x8xi1>, vector<8x8xf32>
    %cst_18 = arith.constant dense<0xFF800000> : vector<8xf32>
    %29 = vector.multi_reduction <maximumf>, %28, %cst_18 [1] : vector<8x8xf32> to vector<8xf32>
    %30 = vector.shape_cast %29 : vector<8xf32> to vector<8x1xf32>
    %31 = vector.broadcast %30 : vector<8x1xf32> to vector<8x8xf32>
    %32 = arith.subf %28, %31 : vector<8x8xf32>
    %33 = math.exp %32 : vector<8x8xf32>
    %cst_19 = arith.constant dense<0.000000e+00> : vector<8xf32>
    %34 = vector.multi_reduction <add>, %33, %cst_19 [1] : vector<8x8xf32> to vector<8xf32>
    %35 = vector.shape_cast %34 : vector<8xf32> to vector<8x1xf32>
    %36 = tpu.reciprocal %35 {approx = true} : vector<8x1xf32> -> vector<8x1xf32>
    %37 = vector.broadcast %36 : vector<8x1xf32> to vector<8x8xf32>
    %38 = arith.mulf %33, %37 : vector<8x8xf32>
    %39 = arith.truncf %38 : vector<8x8xf32> to vector<8x8xbf16>
    %cst_20 = arith.constant dense<0.000000e+00> : vector<8x8xf32>
    %40 = tpu.matmul %39, %25, %cst_20 {dimension_numbers = #tpu.dot_dimension_numbers<[1], [0], [0], [1], [0, 0, 1, 1], [], []>} : vector<8x8xbf16>, vector<8x8xbf16>, vector<8x8xf32> -> vector<8x8xf32>
    %41 = arith.truncf %40 : vector<8x8xf32> to vector<8x8xbf16>
    %c0_21 = arith.constant 0 : index
    %c0_22 = arith.constant 0 : index
    %42 = vector.load %arg11[%c0_21, %c0_22] : memref<8x32xbf16, #tpu.memory_space<vmem>>, vector<8x8xbf16>
    tpu.vector_store %arg11[%c0_21, %c0_22], %41 {strides = array<i32>} : memref<8x32xbf16, #tpu.memory_space<vmem>>, vector<8x8xbf16>,
    %43 = vector.extract_strided_slice %17 {offsets = [0, 8], sizes = [8, 8], strides = [1, 1]} : vector<8x32xbf16> to vector<8x8xbf16>
    %44 = vector.extract_strided_slice %18 {offsets = [0, 8], sizes = [8, 8], strides = [1, 1]} : vector<8x32xbf16> to vector<8x8xbf16>
    %45 = vector.extract_strided_slice %19 {offsets = [0, 8], sizes = [8, 8], strides = [1, 1]} : vector<8x32xbf16> to vector<8x8xbf16>
    %cst_23 = arith.constant dense<0.000000e+00> : vector<8x8xf32>
    %46 = tpu.matmul %43, %44, %cst_23 {dimension_numbers = #tpu.dot_dimension_numbers<[1], [1], [0], [0], [0, 0, 1, 0], [], []>} : vector<8x8xbf16>, vector<8x8xbf16>, vector<8x8xf32> -> vector<8x8xf32>
    %cst_24 = arith.constant 0xFF800000 : f32
    %47 = vector.broadcast %cst_24 : f32 to vector<8x8xf32>
    %48 = arith.select %22, %46, %47 : vector<8x8xi1>, vector<8x8xf32>
    %cst_25 = arith.constant dense<0xFF800000> : vector<8xf32>
    %49 = vector.multi_reduction <maximumf>, %48, %cst_25 [1] : vector<8x8xf32> to vector<8xf32>
    %50 = vector.shape_cast %49 : vector<8xf32> to vector<8x1xf32>
    %51 = vector.broadcast %50 : vector<8x1xf32> to vector<8x8xf32>
    %52 = arith.subf %48, %51 : vector<8x8xf32>
    %53 = math.exp %52 : vector<8x8xf32>
    %cst_26 = arith.constant dense<0.000000e+00> : vector<8xf32>
    %54 = vector.multi_reduction <add>, %53, %cst_26 [1] : vector<8x8xf32> to vector<8xf32>
    %55 = vector.shape_cast %54 : vector<8xf32> to vector<8x1xf32>
    %56 = tpu.reciprocal %55 {approx = true} : vector<8x1xf32> -> vector<8x1xf32>
    %57 = vector.broadcast %56 : vector<8x1xf32> to vector<8x8xf32>
    %58 = arith.mulf %53, %57 : vector<8x8xf32>
    %59 = arith.truncf %58 : vector<8x8xf32> to vector<8x8xbf16>
    %cst_27 = arith.constant dense<0.000000e+00> : vector<8x8xf32>
    %60 = tpu.matmul %59, %45, %cst_27 {dimension_numbers = #tpu.dot_dimension_numbers<[1], [0], [0], [1], [0, 0, 1, 1], [], []>} : vector<8x8xbf16>, vector<8x8xbf16>, vector<8x8xf32> -> vector<8x8xf32>
    %61 = arith.truncf %60 : vector<8x8xf32> to vector<8x8xbf16>
    %c0_28 = arith.constant 0 : index
    %c8 = arith.constant 8 : index
    %62 = vector.load %arg11[%c0_28, %c8] : memref<8x32xbf16, #tpu.memory_space<vmem>>, vector<8x8xbf16>
    tpu.vector_store %arg11[%c0_28, %c8], %61 {strides = array<i32>} : memref<8x32xbf16, #tpu.memory_space<vmem>>, vector<8x8xbf16>,
    %63 = vector.extract_strided_slice %17 {offsets = [0, 16], sizes = [8, 8], strides = [1, 1]} : vector<8x32xbf16> to vector<8x8xbf16>
    %64 = vector.extract_strided_slice %18 {offsets = [0, 16], sizes = [8, 8], strides = [1, 1]} : vector<8x32xbf16> to vector<8x8xbf16>
    %65 = vector.extract_strided_slice %19 {offsets = [0, 16], sizes = [8, 8], strides = [1, 1]} : vector<8x32xbf16> to vector<8x8xbf16>
    %cst_29 = arith.constant dense<0.000000e+00> : vector<8x8xf32>
    %66 = tpu.matmul %63, %64, %cst_29 {dimension_numbers = #tpu.dot_dimension_numbers<[1], [1], [0], [0], [0, 0, 1, 0], [], []>} : vector<8x8xbf16>, vector<8x8xbf16>, vector<8x8xf32> -> vector<8x8xf32>
    %cst_30 = arith.constant 0xFF800000 : f32
    %67 = vector.broadcast %cst_30 : f32 to vector<8x8xf32>
    %68 = arith.select %22, %66, %67 : vector<8x8xi1>, vector<8x8xf32>
    %cst_31 = arith.constant dense<0xFF800000> : vector<8xf32>
    %69 = vector.multi_reduction <maximumf>, %68, %cst_31 [1] : vector<8x8xf32> to vector<8xf32>
    %70 = vector.shape_cast %69 : vector<8xf32> to vector<8x1xf32>
    %71 = vector.broadcast %70 : vector<8x1xf32> to vector<8x8xf32>
    %72 = arith.subf %68, %71 : vector<8x8xf32>
    %73 = math.exp %72 : vector<8x8xf32>
    %cst_32 = arith.constant dense<0.000000e+00> : vector<8xf32>
    %74 = vector.multi_reduction <add>, %73, %cst_32 [1] : vector<8x8xf32> to vector<8xf32>
    %75 = vector.shape_cast %74 : vector<8xf32> to vector<8x1xf32>
    %76 = tpu.reciprocal %75 {approx = true} : vector<8x1xf32> -> vector<8x1xf32>
    %77 = vector.broadcast %76 : vector<8x1xf32> to vector<8x8xf32>
    %78 = arith.mulf %73, %77 : vector<8x8xf32>
    %79 = arith.truncf %78 : vector<8x8xf32> to vector<8x8xbf16>
    %cst_33 = arith.constant dense<0.000000e+00> : vector<8x8xf32>
    %80 = tpu.matmul %79, %65, %cst_33 {dimension_numbers = #tpu.dot_dimension_numbers<[1], [0], [0], [1], [0, 0, 1, 1], [], []>} : vector<8x8xbf16>, vector<8x8xbf16>, vector<8x8xf32> -> vector<8x8xf32>
    %81 = arith.truncf %80 : vector<8x8xf32> to vector<8x8xbf16>
    %c0_34 = arith.constant 0 : index
    %c16 = arith.constant 16 : index
    %82 = vector.load %arg11[%c0_34, %c16] : memref<8x32xbf16, #tpu.memory_space<vmem>>, vector<8x8xbf16>
    tpu.vector_store %arg11[%c0_34, %c16], %81 {strides = array<i32>} : memref<8x32xbf16, #tpu.memory_space<vmem>>, vector<8x8xbf16>,
    %83 = vector.extract_strided_slice %17 {offsets = [0, 24], sizes = [8, 8], strides = [1, 1]} : vector<8x32xbf16> to vector<8x8xbf16>
    %84 = vector.extract_strided_slice %18 {offsets = [0, 24], sizes = [8, 8], strides = [1, 1]} : vector<8x32xbf16> to vector<8x8xbf16>
    %85 = vector.extract_strided_slice %19 {offsets = [0, 24], sizes = [8, 8], strides = [1, 1]} : vector<8x32xbf16> to vector<8x8xbf16>
    %cst_35 = arith.constant dense<0.000000e+00> : vector<8x8xf32>
    %86 = tpu.matmul %83, %84, %cst_35 {dimension_numbers = #tpu.dot_dimension_numbers<[1], [1], [0], [0], [0, 0, 1, 0], [], []>} : vector<8x8xbf16>, vector<8x8xbf16>, vector<8x8xf32> -> vector<8x8xf32>
    %cst_36 = arith.constant 0xFF800000 : f32
    %87 = vector.broadcast %cst_36 : f32 to vector<8x8xf32>
    %88 = arith.select %22, %86, %87 : vector<8x8xi1>, vector<8x8xf32>
    %cst_37 = arith.constant dense<0xFF800000> : vector<8xf32>
    %89 = vector.multi_reduction <maximumf>, %88, %cst_37 [1] : vector<8x8xf32> to vector<8xf32>
    %90 = vector.shape_cast %89 : vector<8xf32> to vector<8x1xf32>
    %91 = vector.broadcast %90 : vector<8x1xf32> to vector<8x8xf32>
    %92 = arith.subf %88, %91 : vector<8x8xf32>
    %93 = math.exp %92 : vector<8x8xf32>
    %cst_38 = arith.constant dense<0.000000e+00> : vector<8xf32>
    %94 = vector.multi_reduction <add>, %93, %cst_38 [1] : vector<8x8xf32> to vector<8xf32>
    %95 = vector.shape_cast %94 : vector<8xf32> to vector<8x1xf32>
    %96 = tpu.reciprocal %95 {approx = true} : vector<8x1xf32> -> vector<8x1xf32>
    %97 = vector.broadcast %96 : vector<8x1xf32> to vector<8x8xf32>
    %98 = arith.mulf %93, %97 : vector<8x8xf32>
    %99 = arith.truncf %98 : vector<8x8xf32> to vector<8x8xbf16>
    %cst_39 = arith.constant dense<0.000000e+00> : vector<8x8xf32>
    %100 = tpu.matmul %99, %85, %cst_39 {dimension_numbers = #tpu.dot_dimension_numbers<[1], [0], [0], [1], [0, 0, 1, 1], [], []>} : vector<8x8xbf16>, vector<8x8xbf16>, vector<8x8xf32> -> vector<8x8xf32>
    %101 = arith.truncf %100 : vector<8x8xf32> to vector<8x8xbf16>
    %c0_40 = arith.constant 0 : index
    %c24 = arith.constant 24 : index
    %102 = vector.load %arg11[%c0_40, %c24] : memref<8x32xbf16, #tpu.memory_space<vmem>>, vector<8x8xbf16>
    tpu.vector_store %arg11[%c0_40, %c24], %101 {strides = array<i32>} : memref<8x32xbf16, #tpu.memory_space<vmem>>, vector<8x8xbf16>,
    %c0_41 = arith.constant 0 : index
    %c0_42 = arith.constant 0 : index
    %103 = vector.load %arg11[%c0_41, %c0_42] : memref<8x32xbf16, #tpu.memory_space<vmem>>, vector<8x32xbf16>
    %c0_43 = arith.constant 0 : index
    %c0_44 = arith.constant 0 : index
    %104 = vector.load %arg8[%c0_43, %c0_44] : memref<32x32xbf16, #tpu.memory_space<vmem>>, vector<32x32xbf16>
    %cst_45 = arith.constant dense<0.000000e+00> : vector<8x32xf32>
    %105 = tpu.matmul %103, %104, %cst_45 {dimension_numbers = #tpu.dot_dimension_numbers<[1], [0], [0], [1], [0, 0, 1, 1], [], []>} : vector<8x32xbf16>, vector<32x32xbf16>, vector<8x32xf32> -> vector<8x32xf32>
    %c0_46 = arith.constant 0 : index
    %c0_47 = arith.constant 0 : index
    %106 = vector.load %arg9[%c0_46, %c0_47] : memref<1x32xf32, #tpu.memory_space<vmem>>, vector<1x32xf32>
    %107 = vector.broadcast %106 : vector<1x32xf32> to vector<8x32xf32>
    %108 = arith.addf %105, %107 : vector<8x32xf32>
    %c0_48 = arith.constant 0 : index
    %c0_49 = arith.constant 0 : index
    %c0_50 = arith.constant 0 : index
    %109 = vector.load %arg10[%c0_48, %c0_49, %c0_50] : memref<1x8x32xf32, #tpu.memory_space<vmem>>, vector<1x8x32xf32>
    %110 = vector.shape_cast %109 : vector<1x8x32xf32> to vector<8x32xf32>
    %111 = vector.shape_cast %108 : vector<8x32xf32> to vector<1x8x32xf32>
    tpu.vector_store %arg10[%c0_48, %c0_49, %c0_50], %111 {strides = array<i32>} : memref<1x8x32xf32, #tpu.memory_space<vmem>>, vector<1x8x32xf32>,
    return
  }
  func.func @transform_0(%arg0: i32) -> (i32, i32, i32) {
    %c0_i32 = arith.constant 0 : i32
    %c0_i32_0 = arith.constant 0 : i32
    %c0_i32_1 = arith.constant 0 : i32
    return %arg0, %c0_i32, %c0_i32_0 : i32, i32, i32
  }
  func.func @transform_1(%arg0: i32) -> (i32, i32) {
    %c0_i32 = arith.constant 0 : i32
    %c0_i32_0 = arith.constant 0 : i32
    %c0_i32_1 = arith.constant 0 : i32
    return %c0_i32, %c0_i32_0 : i32, i32
  }
  func.func @transform_2(%arg0: i32) -> (i32, i32) {
    %c0_i32 = arith.constant 0 : i32
    %c0_i32_0 = arith.constant 0 : i32
    %c0_i32_1 = arith.constant 0 : i32
    return %c0_i32, %c0_i32_0 : i32, i32
  }
  func.func @transform_3(%arg0: i32) -> (i32, i32) {
    %c0_i32 = arith.constant 0 : i32
    %c0_i32_0 = arith.constant 0 : i32
    %c0_i32_1 = arith.constant 0 : i32
    return %c0_i32, %c0_i32_0 : i32, i32
  }
  func.func @transform_4(%arg0: i32) -> (i32, i32) {
    %c0_i32 = arith.constant 0 : i32
    %c0_i32_0 = arith.constant 0 : i32
    %c0_i32_1 = arith.constant 0 : i32
    return %c0_i32, %c0_i32_0 : i32, i32
  }
  func.func @transform_5(%arg0: i32) -> (i32, i32) {
    %c0_i32 = arith.constant 0 : i32
    %c0_i32_0 = arith.constant 0 : i32
    %c0_i32_1 = arith.constant 0 : i32
    return %c0_i32, %c0_i32_0 : i32, i32
  }
  func.func @transform_6(%arg0: i32) -> (i32, i32) {
    %c0_i32 = arith.constant 0 : i32
    %c0_i32_0 = arith.constant 0 : i32
    %c0_i32_1 = arith.constant 0 : i32
    return %c0_i32, %c0_i32_0 : i32, i32
  }
  func.func @transform_7(%arg0: i32) -> (i32, i32) {
    %c0_i32 = arith.constant 0 : i32
    %c0_i32_0 = arith.constant 0 : i32
    %c0_i32_1 = arith.constant 0 : i32
    return %c0_i32, %c0_i32_0 : i32, i32
  }
  func.func @transform_8(%arg0: i32) -> (i32, i32) {
    %c0_i32 = arith.constant 0 : i32
    %c0_i32_0 = arith.constant 0 : i32
    %c0_i32_1 = arith.constant 0 : i32
    return %c0_i32, %c0_i32_0 : i32, i32
  }
  func.func @transform_9(%arg0: i32) -> (i32, i32, i32) {
    %c0_i32 = arith.constant 0 : i32
    %c0_i32_0 = arith.constant 0 : i32
    %c0_i32_1 = arith.constant 0 : i32
    return %arg0, %c0_i32, %c0_i32_0 : i32, i32, i32
  }
}

</mosaic_0001>

<llo_original>
// kernel: tpu_custom_call.1
$region0: #{tpu_custom_call.1}
  #allocation0 [shape = 'u32[]', space=smem, size = 0x4, offset = 0x4, fixed_abs, tag = 'smem constant byte address 0x4 - core index']
  #allocation1 [shape = 'u32[144,128]{1,0:T(1,128)}', space=vmem, size = 0x12000, scoped, tag = 'internal scratch']
  #allocation2 [shape = 'bf16[8,32]{1,0:T(8,128)(2,1)}', space=vmem, size = 0x800, scoped, tag = 'scratch operand']
  %s0 = inlined_call_operand.hbm [shape: bf16[2,8,32], index: 0, kind: input, shape index: {}]
  %s1 = inlined_call_operand.hbm [shape: bf16[32,32], index: 1, kind: input, shape index: {}]
  %s2 = inlined_call_operand.vmem [shape: f32[1,32], index: 2, kind: input, shape index: {}]
  %s3 = inlined_call_operand.hbm [shape: bf16[32,32], index: 3, kind: input, shape index: {}]
  %s4 = inlined_call_operand.vmem [shape: f32[1,32], index: 4, kind: input, shape index: {}]
  %s5 = inlined_call_operand.vmem [shape: bf16[32,32], index: 5, kind: input, shape index: {}]
  %s6 = inlined_call_operand.vmem [shape: f32[1,32], index: 6, kind: input, shape index: {}]
  %s7 = inlined_call_operand.hbm [shape: bf16[32,32], index: 7, kind: input, shape index: {}]
  %s8 = inlined_call_operand.vmem [shape: f32[1,32], index: 8, kind: input, shape index: {}]
  %s9 = inlined_call_operand.hbm [shape: f32[2,8,32], index: 9, kind: output, shape index: {}]
  %s10 = sld [smem:[#allocation0]]
  $region85: #{tpu_custom_call.1} parent=0
    _
  %s12 = ssub.s32 1, %s10
  %s13 = scalar_select 0, %s12, %s10
  $region1: #{tpu_custom_call.1} parent=0
    #allocation3 [shape = 'u8[4096]{0}', space=vmem, size = 0x1000, scoped, tag = 'input window, operand 0']
    #allocation4 [shape = 's32[2]{0}', space=sflag, size = 0x8, scoped, tag = 'scoped memory for tpu_custom_call.1']
    #allocation5 [shape = 's32[2]{0}', space=sflag, size = 0x8, scoped, tag = 'scoped memory for tpu_custom_call.1']
    #allocation6 [shape = 'u8[8192]{0}', space=vmem, size = 0x2000, scoped, tag = 'input window, operand 1, single buffered']
    #allocation7 [shape = 's32[1]{0}', space=sflag, size = 0x4, scoped, tag = 'scoped memory for tpu_custom_call.1']
    #allocation8 [shape = 'u8[8192]{0}', space=vmem, size = 0x2000, scoped, tag = 'input window, operand 3, single buffered']
    #allocation9 [shape = 'u8[8192]{0}', space=vmem, size = 0x2000, scoped, tag = 'input window, operand 7, single buffered']
    #allocation10 [shape = 's32[1]{0}', space=sflag, size = 0x4, scoped, tag = 'scoped memory for tpu_custom_call.1']
    #allocation11 [shape = 'u8[8192]{0}', space=vmem, size = 0x2000, scoped, tag = 'output window, operand 0']
    %14 = vsyncpa [#allocation4], 0
    %s15 = scalar_lea.sflag [#allocation4], 1
    %16 = vsyncpa %s15, 0
    %17 = vsyncpa [#allocation7], 0
    %18 = vsyncpa [#allocation10], 0
    %19 = vsyncpa [#allocation5], 0
    %s20 = scalar_lea.sflag [#allocation5], 1
    %21 = vsyncpa %s20, 0
    loop: start=0, step=1, limit=4
    $region2: #{tpu_custom_call.1} parent=1 // loop_pre_header
      _
    $region3: #{tpu_custom_call.1} parent=1 // loop_header
      %s23 = sphi 0, %s27
      %p24 = scmp.ge.s32.totalorder %s23, 4
      %s33 = sphi 0, %s35
      %s36 = sphi 0, %s33
      %s37 = sphi 0, %s36
      %s53 = sphi 0, %s37
      %s57 = sphi 0, %s57
      %s59 = sphi 0, %s57
      %s60 = sphi 0, %s59
      %s74 = sphi 0, %s60
      %s78 = sphi 0, %s78
      %s80 = sphi 0, %s78
      %s81 = sphi 0, %s80
      %s95 = sphi 0, %s81
      %s99 = sphi 0, %s99
      %s101 = sphi 0, %s99
      %s102 = sphi 0, %s101
      %s116 = sphi 0, %s102
      %s120 = sphi 0, %s120
      %s122 = sphi 0, %s120
      %s123 = sphi 0, %s122
      %s137 = sphi 0, %s123
      %s141 = sphi 0, %s141
      %s143 = sphi 0, %s141
      %s144 = sphi 0, %s143
      %s158 = sphi 0, %s144
      %s162 = sphi 0, %s162
      %s164 = sphi 0, %s162
      %s165 = sphi 0, %s164
      %s179 = sphi 0, %s165
      %s183 = sphi 0, %s183
      %s185 = sphi 0, %s183
      %s186 = sphi 0, %s185
      %s200 = sphi 0, %s186
      %s204 = sphi 0, %s204
      %s206 = sphi 0, %s204
      %s207 = sphi 0, %s206
      %s221 = sphi 0, %s207
      %s227 = sphi 0, %s229
      %s230 = sphi 0, %s227
      %s231 = sphi 0, %s230
      %s247 = sphi 0, %s231
    $region4: #{tpu_custom_call.1} parent=1 // loop_header_branch
      %26 = sbr.rel (%p24) target = $region8
    $region5: #{tpu_custom_call.1} parent=1 // loop_body
      %s28 = ssub.s32 %s23, 1
      %s29 = ssub.s32 %s23, 2
      %s30 = sadd.s32 %s23, 1
      %s31 = ssub.s32 %s23, %s30
      %p32 = scmp.eq.s32.totalorder %s31, 0
      %s34 = sadd.s32 %s33, 1
      %s35 = scalar_select %p32, %s33, %s34
      %p38 = pneg %p32
      %p39 = scmp.eq.s32.totalorder %s23, 1
      %p40 = por %p38, %p39
      %p41 = scmp.ne.s32.totalorder %s33, %s36
      %p42 = scmp.eq.s32.totalorder %s23, 0
      %p43 = por %p41, %p42
      %p44 = scmp.ne.s32.totalorder %s33, %s36
      %p45 = scmp.eq.s32.totalorder %s28, 1
      %p46 = por %p44, %p45
      %p47 = scmp.ne.s32.totalorder %s36, %s37
      %p48 = scmp.eq.s32.totalorder %s28, 0
      %p49 = por %p47, %p48
      %p50 = scmp.ne.s32.totalorder %s36, %s37
      %p51 = scmp.eq.s32.totalorder %s29, 1
      %p52 = por %p50, %p51
      %p54 = scmp.ne.s32.totalorder %s37, %s53
      %p55 = scmp.eq.s32.totalorder %s29, 0
      %p56 = por %p54, %p55
      %s58 = sadd.s32 %s57, 1
      %p61 = scmp.eq.s32.totalorder %s23, 1
      %p62 = scmp.ne.s32.totalorder %s57, %s59
      %p63 = scmp.eq.s32.totalorder %s23, 0
      %p64 = por %p62, %p63
      %p65 = scmp.ne.s32.totalorder %s57, %s59
      %p66 = scmp.eq.s32.totalorder %s28, 1
      %p67 = por %p65, %p66
      %p68 = scmp.ne.s32.totalorder %s59, %s60
      %p69 = scmp.eq.s32.totalorder %s28, 0
      %p70 = por %p68, %p69
      %p71 = scmp.ne.s32.totalorder %s59, %s60
      %p72 = scmp.eq.s32.totalorder %s29, 1
      %p73 = por %p71, %p72
      %p75 = scmp.ne.s32.totalorder %s60, %s74
      %p76 = scmp.eq.s32.totalorder %s29, 0
      %p77 = por %p75, %p76
      %s79 = sadd.s32 %s78, 1
      %p82 = scmp.eq.s32.totalorder %s23, 1
      %p83 = scmp.ne.s32.totalorder %s78, %s80
      %p84 = scmp.eq.s32.totalorder %s23, 0
      %p85 = por %p83, %p84
      %p86 = scmp.ne.s32.totalorder %s78, %s80
      %p87 = scmp.eq.s32.totalorder %s28, 1
      %p88 = por %p86, %p87
      %p89 = scmp.ne.s32.totalorder %s80, %s81
      %p90 = scmp.eq.s32.totalorder %s28, 0
      %p91 = por %p89, %p90
      %p92 = scmp.ne.s32.totalorder %s80, %s81
      %p93 = scmp.eq.s32.totalorder %s29, 1
      %p94 = por %p92, %p93
      %p96 = scmp.ne.s32.totalorder %s81, %s95
      %p97 = scmp.eq.s32.totalorder %s29, 0
      %p98 = por %p96, %p97
      %s100 = sadd.s32 %s99, 1
      %p103 = scmp.eq.s32.totalorder %s23, 1
      %p104 = scmp.ne.s32.totalorder %s99, %s101
      %p105 = scmp.eq.s32.totalorder %s23, 0
      %p106 = por %p104, %p105
      %p107 = scmp.ne.s32.totalorder %s99, %s101
      %p108 = scmp.eq.s32.totalorder %s28, 1
      %p109 = por %p107, %p108
      %p110 = scmp.ne.s32.totalorder %s101, %s102
      %p111 = scmp.eq.s32.totalorder %s28, 0
      %p112 = por %p110, %p111
      %p113 = scmp.ne.s32.totalorder %s101, %s102
      %p114 = scmp.eq.s32.totalorder %s29, 1
      %p115 = por %p113, %p114
      %p117 = scmp.ne.s32.totalorder %s102, %s116
      %p118 = scmp.eq.s32.totalorder %s29, 0
      %p119 = por %p117, %p118
      %s121 = sadd.s32 %s120, 1
      %p124 = scmp.eq.s32.totalorder %s23, 1
      %p125 = scmp.ne.s32.totalorder %s120, %s122
      %p126 = scmp.eq.s32.totalorder %s23, 0
      %p127 = por %p125, %p126
      %p128 = scmp.ne.s32.totalorder %s120, %s122
      %p129 = scmp.eq.s32.totalorder %s28, 1
      %p130 = por %p128, %p129
      %p131 = scmp.ne.s32.totalorder %s122, %s123
      %p132 = scmp.eq.s32.totalorder %s28, 0
      %p133 = por %p131, %p132
      %p134 = scmp.ne.s32.totalorder %s122, %s123
      %p135 = scmp.eq.s32.totalorder %s29, 1
      %p136 = por %p134, %p135
      %p138 = scmp.ne.s32.totalorder %s123, %s137
      %p139 = scmp.eq.s32.totalorder %s29, 0
      %p140 = por %p138, %p139
      %s142 = sadd.s32 %s141, 1
      %p145 = scmp.eq.s32.totalorder %s23, 1
      %p146 = scmp.ne.s32.totalorder %s141, %s143
      %p147 = scmp.eq.s32.totalorder %s23, 0
      %p148 = por %p146, %p147
      %p149 = scmp.ne.s32.totalorder %s141, %s143
      %p150 = scmp.eq.s32.totalorder %s28, 1
      %p151 = por %p149, %p150
      %p152 = scmp.ne.s32.totalorder %s143, %s144
      %p153 = scmp.eq.s32.totalorder %s28, 0
      %p154 = por %p152, %p153
      %p155 = scmp.ne.s32.totalorder %s143, %s144
      %p156 = scmp.eq.s32.totalorder %s29, 1
      %p157 = por %p155, %p156
      %p159 = scmp.ne.s32.totalorder %s144, %s158
      %p160 = scmp.eq.s32.totalorder %s29, 0
      %p161 = por %p159, %p160
      %s163 = sadd.s32 %s162, 1
      %p166 = scmp.eq.s32.totalorder %s23, 1
      %p167 = scmp.ne.s32.totalorder %s162, %s164
      %p168 = scmp.eq.s32.totalorder %s23, 0
      %p169 = por %p167, %p168
      %p170 = scmp.ne.s32.totalorder %s162, %s164
      %p171 = scmp.eq.s32.totalorder %s28, 1
      %p172 = por %p170, %p171
      %p173 = scmp.ne.s32.totalorder %s164, %s165
      %p174 = scmp.eq.s32.totalorder %s28, 0
      %p175 = por %p173, %p174
      %p176 = scmp.ne.s32.totalorder %s164, %s165
      %p177 = scmp.eq.s32.totalorder %s29, 1
      %p178 = por %p176, %p177
      %p180 = scmp.ne.s32.totalorder %s165, %s179
      %p181 = scmp.eq.s32.totalorder %s29, 0
      %p182 = por %p180, %p181
      %s184 = sadd.s32 %s183, 1
      %p187 = scmp.eq.s32.totalorder %s23, 1
      %p188 = scmp.ne.s32.totalorder %s183, %s185
      %p189 = scmp.eq.s32.totalorder %s23, 0
      %p190 = por %p188, %p189
      %p191 = scmp.ne.s32.totalorder %s183, %s185
      %p192 = scmp.eq.s32.totalorder %s28, 1
      %p193 = por %p191, %p192
      %p194 = scmp.ne.s32.totalorder %s185, %s186
      %p195 = scmp.eq.s32.totalorder %s28, 0
      %p196 = por %p194, %p195
      %p197 = scmp.ne.s32.totalorder %s185, %s186
      %p198 = scmp.eq.s32.totalorder %s29, 1
      %p199 = por %p197, %p198
      %p201 = scmp.ne.s32.totalorder %s186, %s200
      %p202 = scmp.eq.s32.totalorder %s29, 0
      %p203 = por %p201, %p202
      %s205 = sadd.s32 %s204, 1
      %p208 = scmp.eq.s32.totalorder %s23, 1
      %p209 = scmp.ne.s32.totalorder %s204, %s206
      %p210 = scmp.eq.s32.totalorder %s23, 0
      %p211 = por %p209, %p210
      %p212 = scmp.ne.s32.totalorder %s204, %s206
      %p213 = scmp.eq.s32.totalorder %s28, 1
      %p214 = por %p212, %p213
      %p215 = scmp.ne.s32.totalorder %s206, %s207
      %p216 = scmp.eq.s32.totalorder %s28, 0
      %p217 = por %p215, %p216
      %p218 = scmp.ne.s32.totalorder %s206, %s207
      %p219 = scmp.eq.s32.totalorder %s29, 1
      %p220 = por %p218, %p219
      %p222 = scmp.ne.s32.totalorder %s207, %s221
      %p223 = scmp.eq.s32.totalorder %s29, 0
      %p224 = por %p222, %p223
      %s225 = ssub.s32 %s23, %s30
      %p226 = scmp.eq.s32.totalorder %s225, 0
      %s228 = sadd.s32 %s227, 1
      %s229 = scalar_select %p226, %s227, %s228
      %p232 = pneg %p226
      %p233 = scmp.eq.s32.totalorder %s23, 1
      %p234 = por %p232, %p233
      %p235 = scmp.ne.s32.totalorder %s227, %s230
      %p236 = scmp.eq.s32.totalorder %s23, 0
      %p237 = por %p235, %p236
      %p238 = scmp.ne.s32.totalorder %s227, %s230
      %p239 = scmp.eq.s32.totalorder %s28, 1
      %p240 = por %p238, %p239
      %p241 = scmp.ne.s32.totalorder %s230, %s231
      %p242 = scmp.eq.s32.totalorder %s28, 0
      %p243 = por %p241, %p242
      %p244 = scmp.ne.s32.totalorder %s230, %s231
      %p245 = scmp.eq.s32.totalorder %s29, 1
      %p246 = por %p244, %p245
      %p248 = scmp.ne.s32.totalorder %s231, %s247
      %p249 = scmp.eq.s32.totalorder %s29, 0
      %p250 = por %p248, %p249
      %p251 = scmp.le.s32.totalorder 1, %s23
      %p252 = scmp.lt.s32.totalorder %s23, 3
      %p253 = pnand %p251, %p252
      %p254 = pneg %p253
      // Predicated region
      $region9: #{tpu_custom_call.1} parent=5 // pred_check
        _
      $region10: #{tpu_custom_call.1} parent=5 // pred_check_branch
        %256 = sbr.rel (%p253) target = $region12
      $region11: #{tpu_custom_call.1} parent=5 // pred_region
        %s257 = ssub.s32 %s23, 1
        // Predicated region
        $region13: #{tpu_custom_call.1} parent=11 // pred_check
          %p258 = pneg %p70
        $region14: #{tpu_custom_call.1} parent=11 // pred_check_branch
          %260 = sbr.rel (%p258) target = $region16
        $region15: #{tpu_custom_call.1} parent=11 // pred_region
          %s262 = ssub.s32 256, 256
          %263 = vsyncadd [#allocation7], %s262
          %s264 = sshll.u32 [#allocation6], 4
          %s265 = int_to_ptr.vmem [resolvable:$true] %s264
          %270 = dma.hbm_to_vmem [thread:$0]  %s1, 256, %s265, [#allocation7], 64, 64, 4
        $region16: #{tpu_custom_call.1} parent=11 // pred_fallthru
          _
        // Predicated region
        $region17: #{tpu_custom_call.1} parent=11 // pred_check
          %p271 = pneg %p91
        $region18: #{tpu_custom_call.1} parent=11 // pred_check_branch
          %273 = sbr.rel (%p271) target = $region20
        $region19: #{tpu_custom_call.1} parent=11 // pred_region
          _
        $region20: #{tpu_custom_call.1} parent=11 // pred_fallthru
          _
        // Predicated region
        $region21: #{tpu_custom_call.1} parent=11 // pred_check
          %p274 = pneg %p112
        $region22: #{tpu_custom_call.1} parent=11 // pred_check_branch
          %276 = sbr.rel (%p274) target = $region24
        $region23: #{tpu_custom_call.1} parent=11 // pred_region
          %s278 = ssub.s32 256, 256
          %279 = vsyncadd [#allocation7], %s278
          %s280 = sshll.u32 [#allocation8], 4
          %s281 = int_to_ptr.vmem [resolvable:$true] %s280
          %286 = dma.hbm_to_vmem [thread:$0]  %s3, 256, %s281, [#allocation7], 64, 64, 4
        $region24: #{tpu_custom_call.1} parent=11 // pred_fallthru
          _
        // Predicated region
        $region25: #{tpu_custom_call.1} parent=11 // pred_check
          %p287 = pneg %p133
        $region26: #{tpu_custom_call.1} parent=11 // pred_check_branch
          %289 = sbr.rel (%p287) target = $region28
        $region27: #{tpu_custom_call.1} parent=11 // pred_region
          _
        $region28: #{tpu_custom_call.1} parent=11 // pred_fallthru
          _
        // Predicated region
        $region29: #{tpu_custom_call.1} parent=11 // pred_check
          %p290 = pneg %p154
        $region30: #{tpu_custom_call.1} parent=11 // pred_check_branch
          %292 = sbr.rel (%p290) target = $region32
        $region31: #{tpu_custom_call.1} parent=11 // pred_region
          _
        $region32: #{tpu_custom_call.1} parent=11 // pred_fallthru
          _
        // Predicated region
        $region33: #{tpu_custom_call.1} parent=11 // pred_check
          %p293 = pneg %p175
        $region34: #{tpu_custom_call.1} parent=11 // pred_check_branch
          %295 = sbr.rel (%p293) target = $region36
        $region35: #{tpu_custom_call.1} parent=11 // pred_region
          _
        $region36: #{tpu_custom_call.1} parent=11 // pred_fallthru
          _
        // Predicated region
        $region37: #{tpu_custom_call.1} parent=11 // pred_check
          %p296 = pneg %p196
        $region38: #{tpu_custom_call.1} parent=11 // pred_check_branch
          %298 = sbr.rel (%p296) target = $region40
        $region39: #{tpu_custom_call.1} parent=11 // pred_region
          %s300 = ssub.s32 256, 256
          %301 = vsyncadd [#allocation10], %s300
          %s302 = sshll.u32 [#allocation9], 4
          %s303 = int_to_ptr.vmem [resolvable:$true] %s302
          %308 = dma.hbm_to_vmem [thread:$0]  %s7, 256, %s303, [#allocation10], 64, 64, 4
        $region40: #{tpu_custom_call.1} parent=11 // pred_fallthru
          _
        // Predicated region
        $region41: #{tpu_custom_call.1} parent=11 // pred_check
          %p309 = pneg %p217
        $region42: #{tpu_custom_call.1} parent=11 // pred_check_branch
          %311 = sbr.rel (%p309) target = $region44
        $region43: #{tpu_custom_call.1} parent=11 // pred_region
          _
        $region44: #{tpu_custom_call.1} parent=11 // pred_fallthru
          _
      $region12: #{tpu_custom_call.1} parent=5 // pred_fallthru
        _
      %p312 = scmp.lt.s32.totalorder %s23, 2
      // Predicated region
      $region45: #{tpu_custom_call.1} parent=5 // pred_check
        %p313 = pneg %p312
      $region46: #{tpu_custom_call.1} parent=5 // pred_check_branch
        %315 = sbr.rel (%p313) target = $region48
      $region47: #{tpu_custom_call.1} parent=5 // pred_region
        // Predicated region
        $region49: #{tpu_custom_call.1} parent=47 // pred_check
          %p316 = pneg %p43
        $region50: #{tpu_custom_call.1} parent=47 // pred_check_branch
          %318 = sbr.rel (%p316) target = $region52
        $region51: #{tpu_custom_call.1} parent=47 // pred_region
          %s319 = sand.u32 %s33, 1
          %s320 = scalar_lea.sflag [#allocation4], %s319
          %s321 = sand.u32 %s33, 1
          %s322 = smul.addr %s321, 4
          %s323 = scalar_lea.vmem [#allocation3], %s322
          %s325 = ssub.s32 64, 64
          %326 = vsyncadd %s320, %s325
          %s327 = smul.addr %s23, 64
          %s328 = scalar_lea.hbm %s0, %s327
          %s330 = sshll.u32 %s323, 4
          %s331 = int_to_ptr.vmem [resolvable:$true] %s330
          %333 = dma.hbm_to_vmem [thread:$0]  %s328, 64, %s331, %s320
        $region52: #{tpu_custom_call.1} parent=47 // pred_fallthru
          _
      $region48: #{tpu_custom_call.1} parent=5 // pred_fallthru
        _
      %p334 = scmp.le.s32.totalorder 1, %s23
      %p335 = scmp.lt.s32.totalorder %s23, 3
      %p336 = pnand %p334, %p335
      %p337 = pneg %p336
      // Predicated region
      $region53: #{tpu_custom_call.1} parent=5 // pred_check
        _
      $region54: #{tpu_custom_call.1} parent=5 // pred_check_branch
        %339 = sbr.rel (%p336) target = $region56
      $region55: #{tpu_custom_call.1} parent=5 // pred_region
        %s340 = ssub.s32 %s23, 1
        %s341 = sand.u32 %s36, 1
        %s342 = scalar_lea.sflag [#allocation4], %s341
        %s343 = sand.u32 %s36, 1
        %s344 = smul.addr %s343, 4
        %s345 = scalar_lea.vmem [#allocation3], %s344
        // Predicated region
        $region57: #{tpu_custom_call.1} parent=55 // pred_check
          %p346 = pneg %p49
        $region58: #{tpu_custom_call.1} parent=55 // pred_check_branch
          %348 = sbr.rel (%p346) target = $region60
        $region59: #{tpu_custom_call.1} parent=55 // pred_region
          %349 = dma.done %s342, 64
        $region60: #{tpu_custom_call.1} parent=55 // pred_fallthru
          _
        // Predicated region
        $region61: #{tpu_custom_call.1} parent=55 // pred_check
          %p350 = pneg %p70
        $region62: #{tpu_custom_call.1} parent=55 // pred_check_branch
          %352 = sbr.rel (%p350) target = $region64
        $region63: #{tpu_custom_call.1} parent=55 // pred_region
          %353 = dma.done [#allocation7], 256
        $region64: #{tpu_custom_call.1} parent=55 // pred_fallthru
          _
        // Predicated region
        $region65: #{tpu_custom_call.1} parent=55 // pred_check
          %p354 = pneg %p112
        $region66: #{tpu_custom_call.1} parent=55 // pred_check_branch
          %356 = sbr.rel (%p354) target = $region68
        $region67: #{tpu_custom_call.1} parent=55 // pred_region
          %357 = dma.done [#allocation7], 256
        $region68: #{tpu_custom_call.1} parent=55 // pred_fallthru
          _
        // Predicated region
        $region69: #{tpu_custom_call.1} parent=55 // pred_check
          %p358 = pneg %p196
        $region70: #{tpu_custom_call.1} parent=55 // pred_check_branch
          %360 = sbr.rel (%p358) target = $region72
        $region71: #{tpu_custom_call.1} parent=55 // pred_region
          %361 = dma.done [#allocation10], 256
        $region72: #{tpu_custom_call.1} parent=55 // pred_fallthru
          _
        %s362 = sand.u32 %s36, 1
        %s363 = scalar_lea.sflag [#allocation4], %s362
        %s364 = sand.u32 %s36, 1
        %s365 = smul.addr %s364, 4
        %s366 = scalar_lea.vmem [#allocation3], %s365
        %p367 = pneg %p49
        %p368 = pneg %p46
        %p369 = pneg %p70
        %p370 = pneg %p67
        %p371 = pneg %p91
        %p372 = pneg %p88
        %p373 = pneg %p112
        %p374 = pneg %p109
        %p375 = pneg %p133
        %p376 = pneg %p130
        %p377 = pneg %p154
        %p378 = pneg %p151
        %p379 = pneg %p175
        %p380 = pneg %p172
        %p381 = pneg %p196
        %p382 = pneg %p193
        %p383 = pneg %p217
        %p384 = pneg %p214
        %p385 = pneg %p243
        %p386 = pneg %p240
        %s387 = sand.u32 %s230, 1
        %s388 = scalar_lea.sflag [#allocation5], %s387
        %s389 = sand.u32 %s230, 1
        %s390 = smul.addr %s389, 8
        %s391 = scalar_lea.vmem [#allocation11], %s390
        %v393 = vld [vmem:[%s345] sm:$0xf]
        %v394 = vld [vmem:[#allocation6] sm:$0xf]
        %v395 = vld [vmem:[#allocation6 + $0x4] sm:$0xf]
        %v396 = vld [vmem:[#allocation6 + $0x8] sm:$0xf]
        %v397 = vld [vmem:[#allocation6 + $0xc] sm:$0xf]
        %v398 = vld [vmem:[%s2] sm:$0x1]
        %v400 = vlaneseq
        %v401 = vshrl.u32 %v400, 7
        %v402 = vsub.s32 0, %v401
        %v403 = vrot.slane %v398, %v402
        %v409 = vunpack.c.l.b16 %v394
        %v410 = vunpack.c.l.b16 %v395
        %v411 = vunpack.c.l.b16 %v396
        %v412 = vunpack.c.l.b16 %v397
        %v413 = vpack.c.b16 %v410, %v409
        %v414 = vpack.c.b16 %v412, %v411
        %vm417 = vcmask 261120
        %v419 = vsel %vm417, %v393, 0
        %421 = vmatprep.subr.bf16.mxu0 0
        %422 = vmatpush1.bf16.msra.mxu0 %v413
        %423 = vmatprep.subr.bf16.mxu0 0
        %424 = vmatpush1.bf16.msra.mxu0 %v414
        %425 = vmatprep.subr.bf16.mxu0 0
        %426 = vmatpush1.bf16.msra.mxu0 0
        %427 = vmatprep.subr.bf16.mxu0 0
        %428 = vmatpush1.bf16.msra.mxu0 0
        %429 = vmatprep.subr.bf16.mxu0 0
        %430 = vmatpush1.bf16.msra.mxu0 0
        %431 = vmatprep.subr.bf16.mxu0 0
        %432 = vmatpush1.bf16.msra.mxu0 0
        %433 = vmatprep.subr.bf16.mxu0 0
        %434 = vmatpush1.bf16.msra.mxu0 0
        %435 = vmatprep.subr.bf16.mxu0 0
        %436 = vmatpush1.bf16.msra.mxu0 0
        %437 = vmatprep.subr.bf16.mxu0 0
        %438 = vmatpush1.bf16.msra.mxu0 0
        %439 = vmatprep.subr.bf16.mxu0 0
        %440 = vmatpush1.bf16.msra.mxu0 0
        %441 = vmatprep.subr.bf16.mxu0 0
        %442 = vmatpush1.bf16.msra.mxu0 0
        %443 = vmatprep.subr.bf16.mxu0 0
        %444 = vmatpush1.bf16.msra.mxu0 0
        %445 = vmatprep.subr.bf16.mxu0 0
        %446 = vmatpush1.bf16.msra.mxu0 0
        %447 = vmatprep.subr.bf16.mxu0 0
        %448 = vmatpush1.bf16.msra.mxu0 0
        %449 = vmatprep.subr.bf16.mxu0 0
        %450 = vmatpush1.bf16.msra.mxu0 0
        %451 = vmatprep.subr.bf16.mxu0 0
        %452 = vmatpush1.bf16.msra.mxu0 0
        %453 = vmatprep.mubr.bf16.mxu0 0
        %454 = vmatmul.mubr.bf16.gmra.mrb[0].mxu0 %v419
        %v455 = vpop.f32.mrb[0].mxu0
        %v456 = vadd.f32 %v403, %v455
        %v457 = vpop.f32.mrb[0].mxu0
        %v458 = vpop.f32.mrb[0].mxu0
        %v459 = vpop.f32.mrb[0].mxu0
        %460 = vdwg.mxu0
        %v461 = vld [vmem:[#allocation8] sm:$0xf]
        %v462 = vld [vmem:[#allocation8 + $0x4] sm:$0xf]
        %v463 = vld [vmem:[#allocation8 + $0x8] sm:$0xf]
        %v464 = vld [vmem:[#allocation8 + $0xc] sm:$0xf]
        %v465 = vld [vmem:[%s4] sm:$0x1]
        %v467 = vlaneseq
        %v468 = vshrl.u32 %v467, 7
        %v469 = vsub.s32 0, %v468
        %v470 = vrot.slane %v465, %v469
        %v476 = vunpack.c.l.b16 %v461
        %v477 = vunpack.c.l.b16 %v462
        %v478 = vunpack.c.l.b16 %v463
        %v479 = vunpack.c.l.b16 %v464
        %v480 = vpack.c.b16 %v477, %v476
        %v481 = vpack.c.b16 %v479, %v478
        %484 = vmatprep.subr.bf16.mxu0 0
        %485 = vmatpush1.bf16.msra.mxu0 %v480
        %486 = vmatprep.subr.bf16.mxu0 0
        %487 = vmatpush1.bf16.msra.mxu0 %v481
        %488 = vmatprep.subr.bf16.mxu0 0
        %489 = vmatpush1.bf16.msra.mxu0 0
        %490 = vmatprep.subr.bf16.mxu0 0
        %491 = vmatpush1.bf16.msra.mxu0 0
        %492 = vmatprep.subr.bf16.mxu0 0
        %493 = vmatpush1.bf16.msra.mxu0 0
        %494 = vmatprep.subr.bf16.mxu0 0
        %495 = vmatpush1.bf16.msra.mxu0 0
        %496 = vmatprep.subr.bf16.mxu0 0
        %497 = vmatpush1.bf16.msra.mxu0 0
        %498 = vmatprep.subr.bf16.mxu0 0
        %499 = vmatpush1.bf16.msra.mxu0 0
        %500 = vmatprep.subr.bf16.mxu0 0
        %501 = vmatpush1.bf16.msra.mxu0 0
        %502 = vmatprep.subr.bf16.mxu0 0
        %503 = vmatpush1.bf16.msra.mxu0 0
        %504 = vmatprep.subr.bf16.mxu0 0
        %505 = vmatpush1.bf16.msra.mxu0 0
        %506 = vmatprep.subr.bf16.mxu0 0
        %507 = vmatpush1.bf16.msra.mxu0 0
        %508 = vmatprep.subr.bf16.mxu0 0
        %509 = vmatpush1.bf16.msra.mxu0 0
        %510 = vmatprep.subr.bf16.mxu0 0
        %511 = vmatpush1.bf16.msra.mxu0 0
        %512 = vmatprep.subr.bf16.mxu0 0
        %513 = vmatpush1.bf16.msra.mxu0 0
        %514 = vmatprep.subr.bf16.mxu0 0
        %515 = vmatpush1.bf16.msra.mxu0 0
        %516 = vmatprep.mubr.bf16.mxu0 0
        %517 = vmatmul.mubr.bf16.gmra.mrb[0].mxu0 %v419
        %v518 = vpop.f32.mrb[0].mxu0
        %v519 = vadd.f32 %v470, %v518
        %v520 = vpop.f32.mrb[0].mxu0
        %v521 = vpop.f32.mrb[0].mxu0
        %v522 = vpop.f32.mrb[0].mxu0
        %523 = vdwg.mxu0
        %v524 = vld [vmem:[%s5] sm:$0xf]
        %v525 = vld [vmem:[%s5 + $0x4] sm:$0xf]
        %v526 = vld [vmem:[%s5 + $0x8] sm:$0xf]
        %v527 = vld [vmem:[%s5 + $0xc] sm:$0xf]
        %v528 = vld [vmem:[%s6] sm:$0x1]
        %v530 = vlaneseq
        %v531 = vshrl.u32 %v530, 7
        %v532 = vsub.s32 0, %v531
        %v533 = vrot.slane %v528, %v532
        %v539 = vunpack.c.l.b16 %v524
        %v540 = vunpack.c.l.b16 %v525
        %v541 = vunpack.c.l.b16 %v526
        %v542 = vunpack.c.l.b16 %v527
        %v543 = vpack.c.b16 %v540, %v539
        %v544 = vpack.c.b16 %v542, %v541
        %547 = vmatprep.subr.bf16.mxu0 0
        %548 = vmatpush1.bf16.msra.mxu0 %v543
        %549 = vmatprep.subr.bf16.mxu0 0
        %550 = vmatpush1.bf16.msra.mxu0 %v544
        %551 = vmatprep.subr.bf16.mxu0 0
        %552 = vmatpush1.bf16.msra.mxu0 0
        %553 = vmatprep.subr.bf16.mxu0 0
        %554 = vmatpush1.bf16.msra.mxu0 0
        %555 = vmatprep.subr.bf16.mxu0 0
        %556 = vmatpush1.bf16.msra.mxu0 0
        %557 = vmatprep.subr.bf16.mxu0 0
        %558 = vmatpush1.bf16.msra.mxu0 0
        %559 = vmatprep.subr.bf16.mxu0 0
        %560 = vmatpush1.bf16.msra.mxu0 0
        %561 = vmatprep.subr.bf16.mxu0 0
        %562 = vmatpush1.bf16.msra.mxu0 0
        %563 = vmatprep.subr.bf16.mxu0 0
        %564 = vmatpush1.bf16.msra.mxu0 0
        %565 = vmatprep.subr.bf16.mxu0 0
        %566 = vmatpush1.bf16.msra.mxu0 0
        %567 = vmatprep.subr.bf16.mxu0 0
        %568 = vmatpush1.bf16.msra.mxu0 0
        %569 = vmatprep.subr.bf16.mxu0 0
        %570 = vmatpush1.bf16.msra.mxu0 0
        %571 = vmatprep.subr.bf16.mxu0 0
        %572 = vmatpush1.bf16.msra.mxu0 0
        %573 = vmatprep.subr.bf16.mxu0 0
        %574 = vmatpush1.bf16.msra.mxu0 0
        %575 = vmatprep.subr.bf16.mxu0 0
        %576 = vmatpush1.bf16.msra.mxu0 0
        %577 = vmatprep.subr.bf16.mxu0 0
        %578 = vmatpush1.bf16.msra.mxu0 0
        %579 = vmatprep.mubr.bf16.mxu0 0
        %580 = vmatmul.mubr.bf16.gmra.mrb[0].mxu0 %v419
        %v581 = vpop.f32.mrb[0].mxu0
        %v582 = vadd.f32 %v533, %v581
        %v583 = vpop.f32.mrb[0].mxu0
        %v584 = vpop.f32.mrb[0].mxu0
        %v585 = vpop.f32.mrb[0].mxu0
        %586 = vdwg.mxu0
        %v587 = vpack.c.bf16 %v456, %v456
        %v588 = vpack.c.bf16 %v519, %v519
        %v589 = vpack.c.bf16 %v582, %v582
        %v590 = vlaneseq
        %v591 = vshrl.u32 %v590, 7
        %v592 = vlaneseq
        %v593 = vand.u32 %v592, 127
        %vm594 = vcmp.le.s32.totalorder %v593, %v591
        %vm595 = vcmask 64512
        %v597 = vsel %vm595, %v587, 0
        %v600 = vsel %vm595, %v588, 0
        %602 = vmatprep.subr.bf16.mxu0 0
        %603 = vmatpush1.bf16.xpose.msra.mxu0 %v600
        %604 = vmatprep.subr.bf16.mxu0 0
        %605 = vmatpush1.bf16.xpose.msra.mxu0 0
        %606 = vmatprep.subr.bf16.mxu0 0
        %607 = vmatpush1.bf16.xpose.msra.mxu0 0
        %608 = vmatprep.subr.bf16.mxu0 0
        %609 = vmatpush1.bf16.xpose.msra.mxu0 0
        %610 = vmatprep.subr.bf16.mxu0 0
        %611 = vmatpush1.bf16.xpose.msra.mxu0 0
        %612 = vmatprep.subr.bf16.mxu0 0
        %613 = vmatpush1.bf16.xpose.msra.mxu0 0
        %614 = vmatprep.subr.bf16.mxu0 0
        %615 = vmatpush1.bf16.xpose.msra.mxu0 0
        %616 = vmatprep.subr.bf16.mxu0 0
        %617 = vmatpush1.bf16.xpose.msra.mxu0 0
        %618 = vmatprep.subr.bf16.mxu0 0
        %619 = vmatpush1.bf16.xpose.msra.mxu0 0
        %620 = vmatprep.subr.bf16.mxu0 0
        %621 = vmatpush1.bf16.xpose.msra.mxu0 0
        %622 = vmatprep.subr.bf16.mxu0 0
        %623 = vmatpush1.bf16.xpose.msra.mxu0 0
        %624 = vmatprep.subr.bf16.mxu0 0
        %625 = vmatpush1.bf16.xpose.msra.mxu0 0
        %626 = vmatprep.subr.bf16.mxu0 0
        %627 = vmatpush1.bf16.xpose.msra.mxu0 0
        %628 = vmatprep.subr.bf16.mxu0 0
        %629 = vmatpush1.bf16.xpose.msra.mxu0 0
        %630 = vmatprep.subr.bf16.mxu0 0
        %631 = vmatpush1.bf16.xpose.msra.mxu0 0
        %632 = vmatprep.subr.bf16.mxu0 0
        %633 = vmatpush1.bf16.xpose.msra.mxu0 0
        %634 = vmatprep.mubr.bf16.mxu0 0
        %635 = vmatmul.mubr.bf16.gmra.mrb[0].mxu0 %v597
        %v636 = vpop.f32.mrb[0].mxu0
        %v637 = vadd.f32 0.0, %v636
        %v638 = vpop.f32.mrb[0].mxu0
        %v639 = vpop.f32.mrb[0].mxu0
        %v640 = vpop.f32.mrb[0].mxu0
        %641 = vdwg.mxu0
        %v642 = vsel %vm594, %v637, -inf
        %v643 = vsel %vm595, %v642, -inf
        %644 = vmax.xlane.f32.xlu0 %v643
        %v645 = vpop.xlane.xlu0 %644
        %v646 = vsub.f32 %v642, %v645
        %v647 = vmul.f32 %v646, 1.442695
        %v648 = vpow.pop %v647
        %v649 = vsel %vm595, %v648, 0.0
        %650 = vadd.xlane.f32.xlu0 %v649
        %v651 = vpop.xlane.xlu0 %650
        %v652 = vrcp.pop %v651
        %v653 = vmul.f32 %v648, %v652
        %v654 = vpack.c.bf16 %v653, %v653
        %v656 = vsel %vm595, %v654, 0
        %vm658 = vcmask 1043456
        %v660 = vsel %vm658, %v589, 0
        %662 = vmatprep.subr.bf16.mxu0 0
        %663 = vmatpush1.bf16.msra.mxu0 %v660
        %664 = vmatprep.subr.bf16.mxu0 0
        %665 = vmatpush1.bf16.msra.mxu0 0
        %666 = vmatprep.subr.bf16.mxu0 0
        %667 = vmatpush1.bf16.msra.mxu0 0
        %668 = vmatprep.subr.bf16.mxu0 0
        %669 = vmatpush1.bf16.msra.mxu0 0
        %670 = vmatprep.subr.bf16.mxu0 0
        %671 = vmatpush1.bf16.msra.mxu0 0
        %672 = vmatprep.subr.bf16.mxu0 0
        %673 = vmatpush1.bf16.msra.mxu0 0
        %674 = vmatprep.subr.bf16.mxu0 0
        %675 = vmatpush1.bf16.msra.mxu0 0
        %676 = vmatprep.subr.bf16.mxu0 0
        %677 = vmatpush1.bf16.msra.mxu0 0
        %678 = vmatprep.subr.bf16.mxu0 0
        %679 = vmatpush1.bf16.msra.mxu0 0
        %680 = vmatprep.subr.bf16.mxu0 0
        %681 = vmatpush1.bf16.msra.mxu0 0
        %682 = vmatprep.subr.bf16.mxu0 0
        %683 = vmatpush1.bf16.msra.mxu0 0
        %684 = vmatprep.subr.bf16.mxu0 0
        %685 = vmatpush1.bf16.msra.mxu0 0
        %686 = vmatprep.subr.bf16.mxu0 0
        %687 = vmatpush1.bf16.msra.mxu0 0
        %688 = vmatprep.subr.bf16.mxu0 0
        %689 = vmatpush1.bf16.msra.mxu0 0
        %690 = vmatprep.subr.bf16.mxu0 0
        %691 = vmatpush1.bf16.msra.mxu0 0
        %692 = vmatprep.subr.bf16.mxu0 0
        %693 = vmatpush1.bf16.msra.mxu0 0
        %694 = vmatprep.mubr.bf16.mxu0 0
        %695 = vmatmul.mubr.bf16.gmra.mrb[0].mxu0 %v656
        %v696 = vpop.f32.mrb[0].mxu0
        %v697 = vadd.f32 0.0, %v696
        %v698 = vpop.f32.mrb[0].mxu0
        %v699 = vpop.f32.mrb[0].mxu0
        %v700 = vpop.f32.mrb[0].mxu0
        %701 = vdwg.mxu0
        %v702 = vpack.c.bf16 %v697, %v697
        %vm703 = vcmask 60416
        %704 = vst.msk [vmem:[#allocation2] sm:$0xf] %vm703, %v702
        %706 = vrot.lane.b32.xlu0 %v587, 120
        %v707 = vpop.permute.xlu0 %706
        %709 = vrot.lane.b32.xlu0 %v588, 120
        %v710 = vpop.permute.xlu0 %709
        %v712 = vsel %vm595, %v707, 0
        %v715 = vsel %vm595, %v710, 0
        %717 = vmatprep.subr.bf16.mxu0 0
        %718 = vmatpush1.bf16.xpose.msra.mxu0 %v715
        %719 = vmatprep.subr.bf16.mxu0 0
        %720 = vmatpush1.bf16.xpose.msra.mxu0 0
        %721 = vmatprep.subr.bf16.mxu0 0
        %722 = vmatpush1.bf16.xpose.msra.mxu0 0
        %723 = vmatprep.subr.bf16.mxu0 0
        %724 = vmatpush1.bf16.xpose.msra.mxu0 0
        %725 = vmatprep.subr.bf16.mxu0 0
        %726 = vmatpush1.bf16.xpose.msra.mxu0 0
        %727 = vmatprep.subr.bf16.mxu0 0
        %728 = vmatpush1.bf16.xpose.msra.mxu0 0
        %729 = vmatprep.subr.bf16.mxu0 0
        %730 = vmatpush1.bf16.xpose.msra.mxu0 0
        %731 = vmatprep.subr.bf16.mxu0 0
        %732 = vmatpush1.bf16.xpose.msra.mxu0 0
        %733 = vmatprep.subr.bf16.mxu0 0
        %734 = vmatpush1.bf16.xpose.msra.mxu0 0
        %735 = vmatprep.subr.bf16.mxu0 0
        %736 = vmatpush1.bf16.xpose.msra.mxu0 0
        %737 = vmatprep.subr.bf16.mxu0 0
        %738 = vmatpush1.bf16.xpose.msra.mxu0 0
        %739 = vmatprep.subr.bf16.mxu0 0
        %740 = vmatpush1.bf16.xpose.msra.mxu0 0
        %741 = vmatprep.subr.bf16.mxu0 0
        %742 = vmatpush1.bf16.xpose.msra.mxu0 0
        %743 = vmatprep.subr.bf16.mxu0 0
        %744 = vmatpush1.bf16.xpose.msra.mxu0 0
        %745 = vmatprep.subr.bf16.mxu0 0
        %746 = vmatpush1.bf16.xpose.msra.mxu0 0
        %747 = vmatprep.subr.bf16.mxu0 0
        %748 = vmatpush1.bf16.xpose.msra.mxu0 0
        %749 = vmatprep.mubr.bf16.mxu0 0
        %750 = vmatmul.mubr.bf16.gmra.mrb[0].mxu0 %v712
        %v751 = vpop.f32.mrb[0].mxu0
        %v752 = vadd.f32 0.0, %v751
        %v753 = vpop.f32.mrb[0].mxu0
        %v754 = vpop.f32.mrb[0].mxu0
        %v755 = vpop.f32.mrb[0].mxu0
        %756 = vdwg.mxu0
        %v757 = vsel %vm594, %v752, -inf
        %v758 = vsel %vm595, %v757, -inf
        %759 = vmax.xlane.f32.xlu0 %v758
        %v760 = vpop.xlane.xlu0 %759
        %v761 = vsub.f32 %v757, %v760
        %v762 = vmul.f32 %v761, 1.442695
        %v763 = vpow.pop %v762
        %v764 = vsel %vm595, %v763, 0.0
        %765 = vadd.xlane.f32.xlu0 %v764
        %v766 = vpop.xlane.xlu0 %765
        %v767 = vrcp.pop %v766
        %v768 = vmul.f32 %v763, %v767
        %v769 = vpack.c.bf16 %v768, %v768
        %771 = vrot.lane.b32.xlu0 %v589, 120
        %v772 = vpop.permute.xlu0 %771
        %v774 = vsel %vm595, %v769, 0
        %v777 = vsel %vm658, %v772, 0
        %779 = vmatprep.subr.bf16.mxu0 0
        %780 = vmatpush1.bf16.msra.mxu0 %v777
        %781 = vmatprep.subr.bf16.mxu0 0
        %782 = vmatpush1.bf16.msra.mxu0 0
        %783 = vmatprep.subr.bf16.mxu0 0
        %784 = vmatpush1.bf16.msra.mxu0 0
        %785 = vmatprep.subr.bf16.mxu0 0
        %786 = vmatpush1.bf16.msra.mxu0 0
        %787 = vmatprep.subr.bf16.mxu0 0
        %788 = vmatpush1.bf16.msra.mxu0 0
        %789 = vmatprep.subr.bf16.mxu0 0
        %790 = vmatpush1.bf16.msra.mxu0 0
        %791 = vmatprep.subr.bf16.mxu0 0
        %792 = vmatpush1.bf16.msra.mxu0 0
        %793 = vmatprep.subr.bf16.mxu0 0
        %794 = vmatpush1.bf16.msra.mxu0 0
        %795 = vmatprep.subr.bf16.mxu0 0
        %796 = vmatpush1.bf16.msra.mxu0 0
        %797 = vmatprep.subr.bf16.mxu0 0
        %798 = vmatpush1.bf16.msra.mxu0 0
        %799 = vmatprep.subr.bf16.mxu0 0
        %800 = vmatpush1.bf16.msra.mxu0 0
        %801 = vmatprep.subr.bf16.mxu0 0
        %802 = vmatpush1.bf16.msra.mxu0 0
        %803 = vmatprep.subr.bf16.mxu0 0
        %804 = vmatpush1.bf16.msra.mxu0 0
        %805 = vmatprep.subr.bf16.mxu0 0
        %806 = vmatpush1.bf16.msra.mxu0 0
        %807 = vmatprep.subr.bf16.mxu0 0
        %808 = vmatpush1.bf16.msra.mxu0 0
        %809 = vmatprep.subr.bf16.mxu0 0
        %810 = vmatpush1.bf16.msra.mxu0 0
        %811 = vmatprep.mubr.bf16.mxu0 0
        %812 = vmatmul.mubr.bf16.gmra.mrb[0].mxu0 %v774
        %v813 = vpop.f32.mrb[0].mxu0
        %v814 = vadd.f32 0.0, %v813
        %v815 = vpop.f32.mrb[0].mxu0
        %v816 = vpop.f32.mrb[0].mxu0
        %v817 = vpop.f32.mrb[0].mxu0
        %818 = vdwg.mxu0
        %v819 = vpack.c.bf16 %v814, %v814
        %v821 = vunpack.c.l.b16 %v819
        %v822 = vpack.c.b16 %v821, %v821
        %823 = vrot.lane.b32.xlu0 %v822, 8
        %v824 = vpop.permute.xlu0 %823
        %vm826 = vcmask 126016
        %827 = vst.msk [vmem:[#allocation2] sm:$0xf] %vm826, %v824
        %828 = vrot.lane.b32.xlu0 %v587, 112
        %v829 = vpop.permute.xlu0 %828
        %830 = vrot.lane.b32.xlu0 %v588, 112
        %v831 = vpop.permute.xlu0 %830
        %v833 = vsel %vm595, %v829, 0
        %v836 = vsel %vm595, %v831, 0
        %838 = vmatprep.subr.bf16.mxu0 0
        %839 = vmatpush1.bf16.xpose.msra.mxu0 %v836
        %840 = vmatprep.subr.bf16.mxu0 0
        %841 = vmatpush1.bf16.xpose.msra.mxu0 0
        %842 = vmatprep.subr.bf16.mxu0 0
        %843 = vmatpush1.bf16.xpose.msra.mxu0 0
        %844 = vmatprep.subr.bf16.mxu0 0
        %845 = vmatpush1.bf16.xpose.msra.mxu0 0
        %846 = vmatprep.subr.bf16.mxu0 0
        %847 = vmatpush1.bf16.xpose.msra.mxu0 0
        %848 = vmatprep.subr.bf16.mxu0 0
        %849 = vmatpush1.bf16.xpose.msra.mxu0 0
        %850 = vmatprep.subr.bf16.mxu0 0
        %851 = vmatpush1.bf16.xpose.msra.mxu0 0
        %852 = vmatprep.subr.bf16.mxu0 0
        %853 = vmatpush1.bf16.xpose.msra.mxu0 0
        %854 = vmatprep.subr.bf16.mxu0 0
        %855 = vmatpush1.bf16.xpose.msra.mxu0 0
        %856 = vmatprep.subr.bf16.mxu0 0
        %857 = vmatpush1.bf16.xpose.msra.mxu0 0
        %858 = vmatprep.subr.bf16.mxu0 0
        %859 = vmatpush1.bf16.xpose.msra.mxu0 0
        %860 = vmatprep.subr.bf16.mxu0 0
        %861 = vmatpush1.bf16.xpose.msra.mxu0 0
        %862 = vmatprep.subr.bf16.mxu0 0
        %863 = vmatpush1.bf16.xpose.msra.mxu0 0
        %864 = vmatprep.subr.bf16.mxu0 0
        %865 = vmatpush1.bf16.xpose.msra.mxu0 0
        %866 = vmatprep.subr.bf16.mxu0 0
        %867 = vmatpush1.bf16.xpose.msra.mxu0 0
        %868 = vmatprep.subr.bf16.mxu0 0
        %869 = vmatpush1.bf16.xpose.msra.mxu0 0
        %870 = vmatprep.mubr.bf16.mxu0 0
        %871 = vmatmul.mubr.bf16.gmra.mrb[0].mxu0 %v833
        %v872 = vpop.f32.mrb[0].mxu0
        %v873 = vadd.f32 0.0, %v872
        %v874 = vpop.f32.mrb[0].mxu0
        %v875 = vpop.f32.mrb[0].mxu0
        %v876 = vpop.f32.mrb[0].mxu0
        %877 = vdwg.mxu0
        %v878 = vsel %vm594, %v873, -inf
        %v879 = vsel %vm595, %v878, -inf
        %880 = vmax.xlane.f32.xlu0 %v879
        %v881 = vpop.xlane.xlu0 %880
        %v882 = vsub.f32 %v878, %v881
        %v883 = vmul.f32 %v882, 1.442695
        %v884 = vpow.pop %v883
        %v885 = vsel %vm595, %v884, 0.0
        %886 = vadd.xlane.f32.xlu0 %v885
        %v887 = vpop.xlane.xlu0 %886
        %v888 = vrcp.pop %v887
        %v889 = vmul.f32 %v884, %v888
        %v890 = vpack.c.bf16 %v889, %v889
        %891 = vrot.lane.b32.xlu0 %v589, 112
        %v892 = vpop.permute.xlu0 %891
        %v894 = vsel %vm595, %v890, 0
        %v897 = vsel %vm658, %v892, 0
        %899 = vmatprep.subr.bf16.mxu0 0
        %900 = vmatpush1.bf16.msra.mxu0 %v897
        %901 = vmatprep.subr.bf16.mxu0 0
        %902 = vmatpush1.bf16.msra.mxu0 0
        %903 = vmatprep.subr.bf16.mxu0 0
        %904 = vmatpush1.bf16.msra.mxu0 0
        %905 = vmatprep.subr.bf16.mxu0 0
        %906 = vmatpush1.bf16.msra.mxu0 0
        %907 = vmatprep.subr.bf16.mxu0 0
        %908 = vmatpush1.bf16.msra.mxu0 0
        %909 = vmatprep.subr.bf16.mxu0 0
        %910 = vmatpush1.bf16.msra.mxu0 0
        %911 = vmatprep.subr.bf16.mxu0 0
        %912 = vmatpush1.bf16.msra.mxu0 0
        %913 = vmatprep.subr.bf16.mxu0 0
        %914 = vmatpush1.bf16.msra.mxu0 0
        %915 = vmatprep.subr.bf16.mxu0 0
        %916 = vmatpush1.bf16.msra.mxu0 0
        %917 = vmatprep.subr.bf16.mxu0 0
        %918 = vmatpush1.bf16.msra.mxu0 0
        %919 = vmatprep.subr.bf16.mxu0 0
        %920 = vmatpush1.bf16.msra.mxu0 0
        %921 = vmatprep.subr.bf16.mxu0 0
        %922 = vmatpush1.bf16.msra.mxu0 0
        %923 = vmatprep.subr.bf16.mxu0 0
        %924 = vmatpush1.bf16.msra.mxu0 0
        %925 = vmatprep.subr.bf16.mxu0 0
        %926 = vmatpush1.bf16.msra.mxu0 0
        %927 = vmatprep.subr.bf16.mxu0 0
        %928 = vmatpush1.bf16.msra.mxu0 0
        %929 = vmatprep.subr.bf16.mxu0 0
        %930 = vmatpush1.bf16.msra.mxu0 0
        %931 = vmatprep.mubr.bf16.mxu0 0
        %932 = vmatmul.mubr.bf16.gmra.mrb[0].mxu0 %v894
        %v933 = vpop.f32.mrb[0].mxu0
        %v934 = vadd.f32 0.0, %v933
        %v935 = vpop.f32.mrb[0].mxu0
        %v936 = vpop.f32.mrb[0].mxu0
        %v937 = vpop.f32.mrb[0].mxu0
        %938 = vdwg.mxu0
        %v939 = vpack.c.bf16 %v934, %v934
        %v941 = vunpack.c.l.b16 %v939
        %v942 = vpack.c.b16 %v941, %v941
        %943 = vrot.lane.b32.xlu0 %v942, 16
        %v944 = vpop.permute.xlu0 %943
        %vm946 = vcmask 191616
        %947 = vst.msk [vmem:[#allocation2] sm:$0xf] %vm946, %v944
        %948 = vrot.lane.b32.xlu0 %v587, 104
        %v949 = vpop.permute.xlu0 %948
        %950 = vrot.lane.b32.xlu0 %v588, 104
        %v951 = vpop.permute.xlu0 %950
        %v953 = vsel %vm595, %v949, 0
        %v956 = vsel %vm595, %v951, 0
        %958 = vmatprep.subr.bf16.mxu0 0
        %959 = vmatpush1.bf16.xpose.msra.mxu0 %v956
        %960 = vmatprep.subr.bf16.mxu0 0
        %961 = vmatpush1.bf16.xpose.msra.mxu0 0
        %962 = vmatprep.subr.bf16.mxu0 0
        %963 = vmatpush1.bf16.xpose.msra.mxu0 0
        %964 = vmatprep.subr.bf16.mxu0 0
        %965 = vmatpush1.bf16.xpose.msra.mxu0 0
        %966 = vmatprep.subr.bf16.mxu0 0
        %967 = vmatpush1.bf16.xpose.msra.mxu0 0
        %968 = vmatprep.subr.bf16.mxu0 0
        %969 = vmatpush1.bf16.xpose.msra.mxu0 0
        %970 = vmatprep.subr.bf16.mxu0 0
        %971 = vmatpush1.bf16.xpose.msra.mxu0 0
        %972 = vmatprep.subr.bf16.mxu0 0
        %973 = vmatpush1.bf16.xpose.msra.mxu0 0
        %974 = vmatprep.subr.bf16.mxu0 0
        %975 = vmatpush1.bf16.xpose.msra.mxu0 0
        %976 = vmatprep.subr.bf16.mxu0 0
        %977 = vmatpush1.bf16.xpose.msra.mxu0 0
        %978 = vmatprep.subr.bf16.mxu0 0
        %979 = vmatpush1.bf16.xpose.msra.mxu0 0
        %980 = vmatprep.subr.bf16.mxu0 0
        %981 = vmatpush1.bf16.xpose.msra.mxu0 0
        %982 = vmatprep.subr.bf16.mxu0 0
        %983 = vmatpush1.bf16.xpose.msra.mxu0 0
        %984 = vmatprep.subr.bf16.mxu0 0
        %985 = vmatpush1.bf16.xpose.msra.mxu0 0
        %986 = vmatprep.subr.bf16.mxu0 0
        %987 = vmatpush1.bf16.xpose.msra.mxu0 0
        %988 = vmatprep.subr.bf16.mxu0 0
        %989 = vmatpush1.bf16.xpose.msra.mxu0 0
        %990 = vmatprep.mubr.bf16.mxu0 0
        %991 = vmatmul.mubr.bf16.gmra.mrb[0].mxu0 %v953
        %v992 = vpop.f32.mrb[0].mxu0
        %v993 = vadd.f32 0.0, %v992
        %v994 = vpop.f32.mrb[0].mxu0
        %v995 = vpop.f32.mrb[0].mxu0
        %v996 = vpop.f32.mrb[0].mxu0
        %997 = vdwg.mxu0
        %v998 = vsel %vm594, %v993, -inf
        %v999 = vsel %vm595, %v998, -inf
        %1000 = vmax.xlane.f32.xlu0 %v999
        %v1001 = vpop.xlane.xlu0 %1000
        %v1002 = vsub.f32 %v998, %v1001
        %v1003 = vmul.f32 %v1002, 1.442695
        %v1004 = vpow.pop %v1003
        %v1005 = vsel %vm595, %v1004, 0.0
        %1006 = vadd.xlane.f32.xlu0 %v1005
        %v1007 = vpop.xlane.xlu0 %1006
        %v1008 = vrcp.pop %v1007
        %v1009 = vmul.f32 %v1004, %v1008
        %v1010 = vpack.c.bf16 %v1009, %v1009
        %1011 = vrot.lane.b32.xlu0 %v589, 104
        %v1012 = vpop.permute.xlu0 %1011
        %v1014 = vsel %vm595, %v1010, 0
        %v1017 = vsel %vm658, %v1012, 0
        %1019 = vmatprep.subr.bf16.mxu0 0
        %1020 = vmatpush1.bf16.msra.mxu0 %v1017
        %1021 = vmatprep.subr.bf16.mxu0 0
        %1022 = vmatpush1.bf16.msra.mxu0 0
        %1023 = vmatprep.subr.bf16.mxu0 0
        %1024 = vmatpush1.bf16.msra.mxu0 0
        %1025 = vmatprep.subr.bf16.mxu0 0
        %1026 = vmatpush1.bf16.msra.mxu0 0
        %1027 = vmatprep.subr.bf16.mxu0 0
        %1028 = vmatpush1.bf16.msra.mxu0 0
        %1029 = vmatprep.subr.bf16.mxu0 0
        %1030 = vmatpush1.bf16.msra.mxu0 0
        %1031 = vmatprep.subr.bf16.mxu0 0
        %1032 = vmatpush1.bf16.msra.mxu0 0
        %1033 = vmatprep.subr.bf16.mxu0 0
        %1034 = vmatpush1.bf16.msra.mxu0 0
        %1035 = vmatprep.subr.bf16.mxu0 0
        %1036 = vmatpush1.bf16.msra.mxu0 0
        %1037 = vmatprep.subr.bf16.mxu0 0
        %1038 = vmatpush1.bf16.msra.mxu0 0
        %1039 = vmatprep.subr.bf16.mxu0 0
        %1040 = vmatpush1.bf16.msra.mxu0 0
        %1041 = vmatprep.subr.bf16.mxu0 0
        %1042 = vmatpush1.bf16.msra.mxu0 0
        %1043 = vmatprep.subr.bf16.mxu0 0
        %1044 = vmatpush1.bf16.msra.mxu0 0
        %1045 = vmatprep.subr.bf16.mxu0 0
        %1046 = vmatpush1.bf16.msra.mxu0 0
        %1047 = vmatprep.subr.bf16.mxu0 0
        %1048 = vmatpush1.bf16.msra.mxu0 0
        %1049 = vmatprep.subr.bf16.mxu0 0
        %1050 = vmatpush1.bf16.msra.mxu0 0
        %1051 = vmatprep.mubr.bf16.mxu0 0
        %1052 = vmatmul.mubr.bf16.gmra.mrb[0].mxu0 %v1014
        %v1053 = vpop.f32.mrb[0].mxu0
        %v1054 = vadd.f32 0.0, %v1053
        %v1055 = vpop.f32.mrb[0].mxu0
        %v1056 = vpop.f32.mrb[0].mxu0
        %v1057 = vpop.f32.mrb[0].mxu0
        %1058 = vdwg.mxu0
        %v1059 = vpack.c.bf16 %v1054, %v1054
        %v1061 = vunpack.c.l.b16 %v1059
        %v1062 = vpack.c.b16 %v1061, %v1061
        %1063 = vrot.lane.b32.xlu0 %v1062, 24
        %v1064 = vpop.permute.xlu0 %1063
        %vm1066 = vcmask 257216
        %1067 = vst.msk [vmem:[#allocation2] sm:$0xf] %vm1066, %v1064
        %v1068 = vld [vmem:[#allocation2] sm:$0xf]
        %v1069 = vld [vmem:[#allocation9] sm:$0xf]
        %v1070 = vld [vmem:[#allocation9 + $0x4] sm:$0xf]
        %v1071 = vld [vmem:[#allocation9 + $0x8] sm:$0xf]
        %v1072 = vld [vmem:[#allocation9 + $0xc] sm:$0xf]
        %v1073 = vld [vmem:[%s8] sm:$0x1]
        %v1075 = vlaneseq
        %v1076 = vshrl.u32 %v1075, 7
        %v1077 = vsub.s32 0, %v1076
        %v1078 = vrot.slane %v1073, %v1077
        %v1084 = vunpack.c.l.b16 %v1069
        %v1085 = vunpack.c.l.b16 %v1070
        %v1086 = vunpack.c.l.b16 %v1071
        %v1087 = vunpack.c.l.b16 %v1072
        %v1088 = vpack.c.b16 %v1085, %v1084
        %v1089 = vpack.c.b16 %v1087, %v1086
        %v1093 = vsel %vm417, %v1068, 0
        %1095 = vmatprep.subr.bf16.mxu0 0
        %1096 = vmatpush1.bf16.msra.mxu0 %v1088
        %1097 = vmatprep.subr.bf16.mxu0 0
        %1098 = vmatpush1.bf16.msra.mxu0 %v1089
        %1099 = vmatprep.subr.bf16.mxu0 0
        %1100 = vmatpush1.bf16.msra.mxu0 0
        %1101 = vmatprep.subr.bf16.mxu0 0
        %1102 = vmatpush1.bf16.msra.mxu0 0
        %1103 = vmatprep.subr.bf16.mxu0 0
        %1104 = vmatpush1.bf16.msra.mxu0 0
        %1105 = vmatprep.subr.bf16.mxu0 0
        %1106 = vmatpush1.bf16.msra.mxu0 0
        %1107 = vmatprep.subr.bf16.mxu0 0
        %1108 = vmatpush1.bf16.msra.mxu0 0
        %1109 = vmatprep.subr.bf16.mxu0 0
        %1110 = vmatpush1.bf16.msra.mxu0 0
        %1111 = vmatprep.subr.bf16.mxu0 0
        %1112 = vmatpush1.bf16.msra.mxu0 0
        %1113 = vmatprep.subr.bf16.mxu0 0
        %1114 = vmatpush1.bf16.msra.mxu0 0
        %1115 = vmatprep.subr.bf16.mxu0 0
        %1116 = vmatpush1.bf16.msra.mxu0 0
        %1117 = vmatprep.subr.bf16.mxu0 0
        %1118 = vmatpush1.bf16.msra.mxu0 0
        %1119 = vmatprep.subr.bf16.mxu0 0
        %1120 = vmatpush1.bf16.msra.mxu0 0
        %1121 = vmatprep.subr.bf16.mxu0 0
        %1122 = vmatpush1.bf16.msra.mxu0 0
        %1123 = vmatprep.subr.bf16.mxu0 0
        %1124 = vmatpush1.bf16.msra.mxu0 0
        %1125 = vmatprep.subr.bf16.mxu0 0
        %1126 = vmatpush1.bf16.msra.mxu0 0
        %1127 = vmatprep.mubr.bf16.mxu0 0
        %1128 = vmatmul.mubr.bf16.gmra.mrb[0].mxu0 %v1093
        %v1129 = vpop.f32.mrb[0].mxu0
        %v1130 = vadd.f32 %v1078, %v1129
        %v1131 = vpop.f32.mrb[0].mxu0
        %v1132 = vpop.f32.mrb[0].mxu0
        %v1133 = vpop.f32.mrb[0].mxu0
        %1134 = vdwg.mxu0
        %1135 = vst.msk [vmem:[%s391] sm:$0xff] %vm417, %v1130
        %s1136 = sand.u32 %s230, 1
        %s1137 = scalar_lea.sflag [#allocation5], %s1136
        %s1138 = sand.u32 %s230, 1
        %s1139 = smul.addr %s1138, 8
        %s1140 = scalar_lea.vmem [#allocation11], %s1139
        // Predicated region
        $region73: #{tpu_custom_call.1} parent=55 // pred_check
          %p1141 = pneg %p240
        $region74: #{tpu_custom_call.1} parent=55 // pred_check_branch
          %1143 = sbr.rel (%p1141) target = $region76
        $region75: #{tpu_custom_call.1} parent=55 // pred_region
          %s1145 = ssub.s32 128, 128
          %1146 = vsyncadd %s1137, %s1145
          %s1147 = smul.addr %s28, 128
          %s1148 = scalar_lea.hbm %s9, %s1147
          %s1150 = sshll.u32 %s1140, 4
          %s1151 = int_to_ptr.vmem [resolvable:$true] %s1150
          %1153 = dma.vmem_to_hbm [thread:$0]  %s1151, 128, %s1148, %s1137
        $region76: #{tpu_custom_call.1} parent=55 // pred_fallthru
          _
      $region56: #{tpu_custom_call.1} parent=5 // pred_fallthru
        _
      %p1154 = scmp.le.s32.totalorder 2, %s23
      // Predicated region
      $region77: #{tpu_custom_call.1} parent=5 // pred_check
        %p1155 = pneg %p1154
      $region78: #{tpu_custom_call.1} parent=5 // pred_check_branch
        %1157 = sbr.rel (%p1155) target = $region80
      $region79: #{tpu_custom_call.1} parent=5 // pred_region
        %s1158 = ssub.s32 %s23, 2
        // Predicated region
        $region81: #{tpu_custom_call.1} parent=79 // pred_check
          %p1159 = pneg %p246
        $region82: #{tpu_custom_call.1} parent=79 // pred_check_branch
          %1161 = sbr.rel (%p1159) target = $region84
        $region83: #{tpu_custom_call.1} parent=79 // pred_region
          %s1162 = sand.u32 %s231, 1
          %s1163 = scalar_lea.sflag [#allocation5], %s1162
          %s1164 = sand.u32 %s231, 1
          %s1165 = smul.addr %s1164, 8
          %s1166 = scalar_lea.vmem [#allocation11], %s1165
          %1167 = dma.done %s1163, 128
        $region84: #{tpu_custom_call.1} parent=79 // pred_fallthru
          _
      $region80: #{tpu_custom_call.1} parent=5 // pred_fallthru
        _
    $region6: #{tpu_custom_call.1} parent=1 // loop_footer
      %s27 = sadd.s32 1, %s23
    $region7: #{tpu_custom_call.1} parent=1 // loop_footer_branch
      %22 = sbr.rel target = $region3
    $region8: #{tpu_custom_call.1} parent=1 // loop_exit
      _
    %1168 = vsyncpa [#allocation4], 1
    %s1169 = scalar_lea.sflag [#allocation4], 1
    %1170 = vsyncpa %s1169, 1
    %1171 = vsyncpa [#allocation7], 1
    %1172 = vsyncpa [#allocation10], 1
    %1173 = vsyncpa [#allocation5], 1
    %s1174 = scalar_lea.sflag [#allocation5], 1
    %1175 = vsyncpa %s1174, 1

</llo_original>
